<compile_context>
chip_gen: v7x
topology: tpu7x:2x2x1
jax: 0.10.0
libtpu: 0.0.40
codegen_flags: <defaults>
</compile_context>

<pallas_src>
import functools

import jax
import jax.numpy as jnp
from jax.experimental import pallas as pl
from jax.experimental.pallas import tpu as pltpu


# ---------------------------------------------------------------------------
# Kernel
# ---------------------------------------------------------------------------
def _moe_kernel(
    # inputs
    x_ref,          # [bt, D]              bf16 (cast in wrapper)
    w1cat_ref,      # [D, GH + 2*n_per*H]  bf16 (gating L1 | t1 experts L1 | t2 experts L1)
    b1cat_ref,      # [1, GH + 2*n_per*H]  f32
    wg2_ref,        # [GH, E]              bf16
    bg2_ref,        # [1, E]               f32
    w2a_ref,        # [n_per, H, T1]       bf16
    b2a_ref,        # [n_per, 1, T1]       f32
    w2b_ref,        # [n_per, H, T2]       bf16
    b2b_ref,        # [n_per, 1, T2]       f32
    # outputs
    packed_ref,     # [bt, PACK]           f32  (gates | t1w | t2w | zero pad)
    eo1_ref,        # [n_per, bt, T1]      bf16 raw expert outputs, teacher 1
    eo2_ref,        # [n_per, bt, T2]      bf16 raw expert outputs, teacher 2
    t1out_ref,      # [bt, T1]             f32  weighted combination, teacher 1
    t2out_ref,      # [bt, T2]             f32  weighted combination, teacher 2
):
    n_per = eo1_ref.shape[0]
    E = 2 * n_per
    GH = wg2_ref.shape[0]
    H = w2a_ref.shape[1]
    bt = packed_ref.shape[0]
    pack_w = packed_ref.shape[1]

    def _softmax(v):  # f32 elementwise; divide goes to the EUP slot
        m = jnp.max(v, axis=-1, keepdims=True)
        e = jnp.exp(v - m)
        return e * pl.reciprocal(jnp.sum(e, axis=-1, keepdims=True), approx=True)

    # ---- one wide fused first-layer matmul (gating + all experts share x) --
    h_all = (
        jnp.dot(x_ref[...], w1cat_ref[...], preferred_element_type=jnp.float32)
        + b1cat_ref[...]
    )
    h_all = jnp.maximum(h_all, 0.0)      # ReLU (f32); Dropout = identity (eval)
    h_bf = h_all.astype(jnp.bfloat16)    # single bf16 copy feeds every 2nd-layer matmul

    # ---- gating second layer + softmax ------------------------------------
    logits = (
        jnp.dot(h_bf[:, :GH], wg2_ref[...], preferred_element_type=jnp.float32)
        + bg2_ref[...]
    )
    gates = _softmax(logits)
    g1n = _softmax(gates[:, :n_per])   # re-normalized teacher-1 weights
    g2n = _softmax(gates[:, n_per:])   # re-normalized teacher-2 weights

    # pack tiny outputs into one lane-dense unmasked store
    parts = [gates, g1n, g2n]
    pad_w = pack_w - (E + 2 * n_per)
    if pad_w > 0:
        parts.append(jnp.zeros((bt, pad_w), jnp.float32))
    packed_ref[...] = jnp.concatenate(parts, axis=-1)

    # ---- per-expert second layers, teacher-1 / teacher-2 interleaved ------
    acc1 = jnp.zeros(t1out_ref.shape, jnp.float32)
    acc2 = jnp.zeros(t2out_ref.shape, jnp.float32)
    for i in range(n_per):  # static unroll; n_per is small
        h1 = h_bf[:, GH + i * H: GH + (i + 1) * H]
        h2 = h_bf[:, GH + (n_per + i) * H: GH + (n_per + i + 1) * H]
        o1 = (
            jnp.dot(h1, w2a_ref[i], preferred_element_type=jnp.float32)
            + b2a_ref[i]
        )
        o2 = (
            jnp.dot(h2, w2b_ref[i], preferred_element_type=jnp.float32)
            + b2b_ref[i]
        )
        eo1_ref[i] = o1.astype(jnp.bfloat16)   # bf16 writeback (mem-bound lever)
        eo2_ref[i] = o2.astype(jnp.bfloat16)
        acc1 = acc1 + o1 * g1n[:, i: i + 1]    # accumulate from f32 results
        acc2 = acc2 + o2 * g2n[:, i: i + 1]
    t1out_ref[...] = acc1
    t2out_ref[...] = acc2


# ---------------------------------------------------------------------------
# Wrapper
# ---------------------------------------------------------------------------
def _pick_batch_tile(B):
    # Tiny batches: single grid step (per-step overhead dominates).
    # B >= 32: guarantee >= 2 grid steps so the "parallel" batch axis can be
    # sharded across both v7x TensorCores; prefer multiples of 16 (dense bf16
    # sublane packing).  Harmless tiny overhead on v5e/v6e (1 TC).
    if B < 32:
        return B
    for bt in (256, 128, 64, 32, 16, 8):
        if B % bt == 0 and B // bt >= 2:
            return bt
    return B


def _round_up(x, m):
    return ((x + m - 1) // m) * m


@functools.partial(jax.jit, static_argnames=("num_experts",))
def moe_layer_forward(x, params, *, num_experts):
    B, D = x.shape
    n_per = num_experts // 2
    GH = params["wg1"].shape[-1]
    H = params["w1a"].shape[-1]
    T1 = params["w2a"].shape[-1]
    T2 = params["w2b"].shape[-1]
    E = num_experts

    f32, bf16 = jnp.float32, jnp.bfloat16

    # Lane-dense packed width for (gates | t1w | t2w); always >= needed.
    PACK = max(128, _round_up(E + 2 * n_per, 128))

    # Layout plumbing (wrapper side): fuse gating-L1 + all expert-L1 weights
    # into one [D, GH + 2*n_per*H] matrix; cast matmul operands (incl. x) to
    # bf16 — accumulation stays f32 inside the kernel. Biases stay f32.
    x_bf = x.astype(bf16)
    w1cat = jnp.concatenate(
        [
            params["wg1"],
            jnp.transpose(params["w1a"], (1, 0, 2)).reshape(D, n_per * H),
            jnp.transpose(params["w1b"], (1, 0, 2)).reshape(D, n_per * H),
        ],
        axis=1,
    ).astype(bf16)
    b1cat = jnp.concatenate(
        [
            params["bg1"].reshape(1, GH),
            params["b1a"].reshape(1, n_per * H),
            params["b1b"].reshape(1, n_per * H),
        ],
        axis=1,
    ).astype(f32)
    wg2 = params["wg2"].astype(bf16)
    bg2 = params["bg2"].astype(f32)
    w2a = params["w2a"].astype(bf16)
    b2a = params["b2a"].astype(f32)
    w2b = params["w2b"].astype(bf16)
    b2b = params["b2b"].astype(f32)

    Hcat = GH + 2 * n_per * H
    bt = _pick_batch_tile(B)
    grid = (B // bt,)

    # Batch-tiled input / outputs; weights stay VMEM-resident across the grid.
    in_specs = [
        pl.BlockSpec((bt, D), lambda b: (b, 0)),
        pl.BlockSpec((D, Hcat), lambda b: (0, 0)),
        pl.BlockSpec((1, Hcat), lambda b: (0, 0)),
        pl.BlockSpec((GH, E), lambda b: (0, 0)),
        pl.BlockSpec((1, E), lambda b: (0, 0)),
        pl.BlockSpec((n_per, H, T1), lambda b: (0, 0, 0)),
        pl.BlockSpec((n_per, 1, T1), lambda b: (0, 0, 0)),
        pl.BlockSpec((n_per, H, T2), lambda b: (0, 0, 0)),
        pl.BlockSpec((n_per, 1, T2), lambda b: (0, 0, 0)),
    ]
    out_specs = (
        pl.BlockSpec((bt, PACK), lambda b: (b, 0)),
        pl.BlockSpec((n_per, bt, T1), lambda b: (0, b, 0)),
        pl.BlockSpec((n_per, bt, T2), lambda b: (0, b, 0)),
        pl.BlockSpec((bt, T1), lambda b: (b, 0)),
        pl.BlockSpec((bt, T2), lambda b: (b, 0)),
    )
    out_shape = (
        jax.ShapeDtypeStruct((B, PACK), f32),        # packed gates|t1w|t2w
        jax.ShapeDtypeStruct((n_per, B, T1), bf16),  # stacked expert outs t1 (bf16)
        jax.ShapeDtypeStruct((n_per, B, T2), bf16),  # stacked expert outs t2 (bf16)
        jax.ShapeDtypeStruct((B, T1), f32),          # teacher1_output
        jax.ShapeDtypeStruct((B, T2), f32),          # teacher2_output
    )

    # Explicit scoped-VMEM limit from the actual block sizes (default
    # double-buffering on every block) + intermediates, with headroom.
    in_block_bytes = (
        bt * D * 2 + D * Hcat * 2 + Hcat * 4 + GH * E * 2 + E * 4
        + n_per * H * T1 * 2 + n_per * T1 * 4
        + n_per * H * T2 * 2 + n_per * T2 * 4
    )
    out_block_bytes = (
        bt * PACK * 4 + n_per * bt * (T1 + T2) * 2 + bt * (T1 + T2) * 4
    )
    interm_bytes = bt * Hcat * (4 + 2)  # h_all (f32) + h_bf (bf16)
    vmem_limit = int(
        min(100 * 1024 * 1024,
            max(32 * 1024 * 1024,
                2 * (2 * (in_block_bytes + out_block_bytes) + interm_bytes)))
    )

    flops = (
        2 * B * D * Hcat
        + 2 * B * GH * E
        + 2 * B * H * n_per * (T1 + T2)
        + 2 * B * n_per * (T1 + T2)
    )
    transcendentals = B * (E + 2 * n_per)
    bytes_accessed = (
        B * D * 2 + D * Hcat * 2 + Hcat * 4 + GH * E * 2 + E * 4
        + n_per * H * T1 * 2 + n_per * T1 * 4
        + n_per * H * T2 * 2 + n_per * T2 * 4
        + B * PACK * 4
        + n_per * B * (T1 + T2) * 2
        + B * (T1 + T2) * 4
    )

    packed, eo1, eo2, t1out, t2out = pl.pallas_call(
        _moe_kernel,
        grid=grid,
        in_specs=in_specs,
        out_specs=out_specs,
        out_shape=out_shape,
        compiler_params=pltpu.CompilerParams(
            dimension_semantics=("parallel",),
            vmem_limit_bytes=vmem_limit,
        ),
        cost_estimate=pl.CostEstimate(
            flops=flops,
            transcendentals=transcendentals,
            bytes_accessed=bytes_accessed,
        ),
    )(x_bf, w1cat, b1cat, wg2, bg2, w2a, b2a, w2b, b2b)

    gates = packed[:, :E]
    t1w = packed[:, E:E + n_per]
    t2w = packed[:, E + n_per:E + 2 * n_per]

    return {
        # Stacked per-teacher expert outputs ([n_per, B, T1], [n_per, B, T2])
        # in bfloat16 (raw activations; distillation losses tolerate bf16).
        # Consumers should index lazily instead of materializing a Python list
        # of per-expert slices (avoids HBM slice copies).
        "expert_outputs": (eo1, eo2),
        "gating_weights": gates,
        "teacher1_output": t1out,
        "teacher2_output": t2out,
        "teacher1_weights": t1w,
        "teacher2_weights": t2w,
    }


# ---------------------------------------------------------------------------
# Deterministic parameter construction (synthetic, no checkpoint)
# ---------------------------------------------------------------------------
def init_params(key, input_dim, expert_hidden, t1_dim, t2_dim, num_experts,
                gate_hidden=128):
    n_per = num_experts // 2
    keys = jax.random.split(key, 12)
    s = 0.02

    def rnd(k, shape):
        return (s * jax.random.normal(k, shape)).astype(jnp.float32)

    return {
        # gating network
        "wg1": rnd(keys[0], (input_dim, gate_hidden)),
        "bg1": rnd(keys[1], (1, gate_hidden)),
        "wg2": rnd(keys[2], (gate_hidden, num_experts)),
        "bg2": rnd(keys[3], (1, num_experts)),
        # teacher-1 experts (stacked over experts)
        "w1a": rnd(keys[4], (n_per, input_dim, expert_hidden)),
        "b1a": rnd(keys[5], (n_per, 1, expert_hidden)),
        "w2a": rnd(keys[6], (n_per, expert_hidden, t1_dim)),
        "b2a": rnd(keys[7], (n_per, 1, t1_dim)),
        # teacher-2 experts
        "w1b": rnd(keys[8], (n_per, input_dim, expert_hidden)),
        "b1b": rnd(keys[9], (n_per, 1, expert_hidden)),
        "w2b": rnd(keys[10], (n_per, expert_hidden, t2_dim)),
        "b2b": rnd(keys[11], (n_per, 1, t2_dim)),
    }


# ---------------------------------------------------------------------------
# Pure-JAX reference (f32) for correctness check
# ---------------------------------------------------------------------------
def moe_reference(x, params, num_experts):
    n_per = num_experts // 2

    def softmax(v):
        m = jnp.max(v, -1, keepdims=True)
        e = jnp.exp(v - m)
        return e / jnp.sum(e, -1, keepdims=True)

    hg = jnp.maximum(x @ params["wg1"] + params["bg1"], 0.0)
    gates = softmax(hg @ params["wg2"] + params["bg2"])
    g1n = softmax(gates[:, :n_per])
    g2n = softmax(gates[:, n_per:])

    def experts(w1, b1, w2, b2):
        outs = []
        for i in range(n_per):
            h = jnp.maximum(x @ w1[i] + b1[i], 0.0)
            outs.append(h @ w2[i] + b2[i])
        return jnp.stack(outs, 0)

    eo1 = experts(params["w1a"], params["b1a"], params["w2a"], params["b2a"])
    eo2 = experts(params["w1b"], params["b1b"], params["w2b"], params["b2b"])
    t1out = jnp.sum(eo1 * g1n.T[:, :, None], axis=0)
    t2out = jnp.sum(eo2 * g2n.T[:, :, None], axis=0)
    return gates, g1n, g2n, eo1, eo2, t1out, t2out


# ---------------------------------------------------------------------------
if __name__ == "__main__":
    # Small shapes consistent with the module:
    #   batch=8, input_dim=32, expert_hidden=128, teacher1_dim=256,
    #   teacher2_dim=128, num_experts=6
    B, D = 8, 32
    EXPERT_HIDDEN = 128
    T1_DIM, T2_DIM = 256, 128
    NUM_EXPERTS = 6

    key = jax.random.PRNGKey(0)
    kx, kp = jax.random.split(key)
    x = jax.random.normal(kx, (B, D), dtype=jnp.float32)
    params = init_params(kp, D, EXPERT_HIDDEN, T1_DIM, T2_DIM, NUM_EXPERTS)

    out = moe_layer_forward(x, params, num_experts=NUM_EXPERTS)
    jax.block_until_ready(out)

    # Correctness check against pure-JAX f32 reference. Tolerance relaxed to
    # 1e-2 because matmul operands are bf16 (f32 accumulation), the raw
    # expert outputs are emitted in bf16, and the softmax uses the EUP
    # approximate reciprocal.
    gates_r, g1n_r, g2n_r, eo1_r, eo2_r, t1_r, t2_r = moe_reference(
        x, params, NUM_EXPERTS
    )
    TOL = dict(atol=1e-2, rtol=1e-2)
    assert jnp.allclose(out["gating_weights"], gates_r, **TOL)
    assert jnp.allclose(out["teacher1_weights"], g1n_r, **TOL)
    assert jnp.allclose(out["teacher2_weights"], g2n_r, **TOL)
    assert jnp.allclose(out["teacher1_output"], t1_r, **TOL)
    assert jnp.allclose(out["teacher2_output"], t2_r, **TOL)
    eo1_k, eo2_k = out["expert_outputs"]
    assert jnp.allclose(eo1_k.astype(jnp.float32), eo1_r, **TOL)
    assert jnp.allclose(eo2_k.astype(jnp.float32), eo2_r, **TOL)

    print("KERNEL_OK")
</pallas_src>

<mosaic_0001>
module attributes {stable_mosaic.version = 11 : i64} {
  func.func @_moe_kernel(%arg0: i32, %arg1: memref<8x32xbf16, #tpu.memory_space<vmem>>, %arg2: memref<32x896xbf16, #tpu.memory_space<vmem>>, %arg3: memref<1x896xf32, #tpu.memory_space<vmem>>, %arg4: memref<128x6xbf16, #tpu.memory_space<vmem>>, %arg5: memref<1x6xf32, #tpu.memory_space<vmem>>, %arg6: memref<3x128x256xbf16, #tpu.memory_space<vmem>>, %arg7: memref<3x1x256xf32, #tpu.memory_space<vmem>>, %arg8: memref<3x128x128xbf16, #tpu.memory_space<vmem>>, %arg9: memref<3x1x128xf32, #tpu.memory_space<vmem>>, %arg10: memref<8x128xf32, #tpu.memory_space<vmem>>, %arg11: memref<3x8x256xbf16, #tpu.memory_space<vmem>>, %arg12: memref<3x8x128xbf16, #tpu.memory_space<vmem>>, %arg13: memref<8x256xf32, #tpu.memory_space<vmem>>, %arg14: memref<8x128xf32, #tpu.memory_space<vmem>>) attributes {dimension_semantics = [#tpu.dimension_semantics<parallel>], iteration_bounds = array<i64: 1>, scalar_prefetch = 0 : i64, scratch_operands = 0 : i64, tpu.core_type = #tpu.core_type<tc>, window_params = [{transform_indices = @transform_0, window_bounds = array<i64: 8, 32>}, {pipeline_mode = #tpu.pipeline_mode<synchronous>, transform_indices = @transform_1, window_bounds = array<i64: 32, 896>}, {pipeline_mode = #tpu.pipeline_mode<synchronous>, transform_indices = @transform_2, window_bounds = array<i64: 1, 896>}, {pipeline_mode = #tpu.pipeline_mode<synchronous>, transform_indices = @transform_3, window_bounds = array<i64: 128, 6>}, {pipeline_mode = #tpu.pipeline_mode<synchronous>, transform_indices = @transform_4, window_bounds = array<i64: 1, 6>}, {pipeline_mode = #tpu.pipeline_mode<synchronous>, transform_indices = @transform_5, window_bounds = array<i64: 3, 128, 256>}, {pipeline_mode = #tpu.pipeline_mode<synchronous>, transform_indices = @transform_6, window_bounds = array<i64: 3, 1, 256>}, {pipeline_mode = #tpu.pipeline_mode<synchronous>, transform_indices = @transform_7, window_bounds = array<i64: 3, 128, 128>}, {pipeline_mode = #tpu.pipeline_mode<synchronous>, transform_indices = @transform_8, window_bounds = array<i64: 3, 1, 128>}, {transform_indices = @transform_9, window_bounds = array<i64: 8, 128>}, {transform_indices = @transform_10, window_bounds = array<i64: 3, 8, 256>}, {transform_indices = @transform_11, window_bounds = array<i64: 3, 8, 128>}, {transform_indices = @transform_12, window_bounds = array<i64: 8, 256>}, {transform_indices = @transform_13, window_bounds = array<i64: 8, 128>}]} {
    %c0 = arith.constant 0 : index
    %c0_0 = arith.constant 0 : index
    %0 = vector.load %arg1[%c0, %c0_0] : memref<8x32xbf16, #tpu.memory_space<vmem>>, vector<8x32xbf16>
    %c0_1 = arith.constant 0 : index
    %c0_2 = arith.constant 0 : index
    %1 = vector.load %arg2[%c0_1, %c0_2] : memref<32x896xbf16, #tpu.memory_space<vmem>>, vector<32x896xbf16>
    %cst = arith.constant dense<0.000000e+00> : vector<8x896xf32>
    %2 = tpu.matmul %0, %1, %cst {dimension_numbers = #tpu.dot_dimension_numbers<[1], [0], [0], [1], [0, 0, 1, 1], [], []>} : vector<8x32xbf16>, vector<32x896xbf16>, vector<8x896xf32> -> vector<8x896xf32>
    %c0_3 = arith.constant 0 : index
    %c0_4 = arith.constant 0 : index
    %3 = vector.load %arg3[%c0_3, %c0_4] : memref<1x896xf32, #tpu.memory_space<vmem>>, vector<1x896xf32>
    %4 = vector.broadcast %3 : vector<1x896xf32> to vector<8x896xf32>
    %5 = arith.addf %2, %4 : vector<8x896xf32>
    %cst_5 = arith.constant 0.000000e+00 : f32
    %6 = vector.broadcast %cst_5 : f32 to vector<8x896xf32>
    %7 = arith.maximumf %5, %6 : vector<8x896xf32>
    %8 = arith.truncf %7 : vector<8x896xf32> to vector<8x896xbf16>
    %9 = vector.extract_strided_slice %8 {offsets = [0, 0], sizes = [8, 128], strides = [1, 1]} : vector<8x896xbf16> to vector<8x128xbf16>
    %c0_6 = arith.constant 0 : index
    %c0_7 = arith.constant 0 : index
    %10 = vector.load %arg4[%c0_6, %c0_7] : memref<128x6xbf16, #tpu.memory_space<vmem>>, vector<128x6xbf16>
    %cst_8 = arith.constant dense<0.000000e+00> : vector<8x6xf32>
    %11 = tpu.matmul %9, %10, %cst_8 {dimension_numbers = #tpu.dot_dimension_numbers<[1], [0], [0], [1], [0, 0, 1, 1], [], []>} : vector<8x128xbf16>, vector<128x6xbf16>, vector<8x6xf32> -> vector<8x6xf32>
    %c0_9 = arith.constant 0 : index
    %c0_10 = arith.constant 0 : index
    %12 = vector.load %arg5[%c0_9, %c0_10] : memref<1x6xf32, #tpu.memory_space<vmem>>, vector<1x6xf32>
    %13 = vector.broadcast %12 : vector<1x6xf32> to vector<8x6xf32>
    %14 = arith.addf %11, %13 : vector<8x6xf32>
    %cst_11 = arith.constant dense<0xFF800000> : vector<8xf32>
    %15 = vector.multi_reduction <maximumf>, %14, %cst_11 [1] : vector<8x6xf32> to vector<8xf32>
    %16 = vector.shape_cast %15 : vector<8xf32> to vector<8x1xf32>
    %17 = vector.broadcast %16 : vector<8x1xf32> to vector<8x6xf32>
    %18 = arith.subf %14, %17 : vector<8x6xf32>
    %19 = math.exp %18 : vector<8x6xf32>
    %cst_12 = arith.constant dense<0.000000e+00> : vector<8xf32>
    %20 = vector.multi_reduction <add>, %19, %cst_12 [1] : vector<8x6xf32> to vector<8xf32>
    %21 = vector.shape_cast %20 : vector<8xf32> to vector<8x1xf32>
    %22 = tpu.reciprocal %21 {approx = true} : vector<8x1xf32> -> vector<8x1xf32>
    %23 = vector.broadcast %22 : vector<8x1xf32> to vector<8x6xf32>
    %24 = arith.mulf %19, %23 : vector<8x6xf32>
    %25 = vector.extract_strided_slice %24 {offsets = [0, 0], sizes = [8, 3], strides = [1, 1]} : vector<8x6xf32> to vector<8x3xf32>
    %cst_13 = arith.constant dense<0xFF800000> : vector<8xf32>
    %26 = vector.multi_reduction <maximumf>, %25, %cst_13 [1] : vector<8x3xf32> to vector<8xf32>
    %27 = vector.shape_cast %26 : vector<8xf32> to vector<8x1xf32>
    %28 = vector.broadcast %27 : vector<8x1xf32> to vector<8x3xf32>
    %29 = arith.subf %25, %28 : vector<8x3xf32>
    %30 = math.exp %29 : vector<8x3xf32>
    %cst_14 = arith.constant dense<0.000000e+00> : vector<8xf32>
    %31 = vector.multi_reduction <add>, %30, %cst_14 [1] : vector<8x3xf32> to vector<8xf32>
    %32 = vector.shape_cast %31 : vector<8xf32> to vector<8x1xf32>
    %33 = tpu.reciprocal %32 {approx = true} : vector<8x1xf32> -> vector<8x1xf32>
    %34 = vector.broadcast %33 : vector<8x1xf32> to vector<8x3xf32>
    %35 = arith.mulf %30, %34 : vector<8x3xf32>
    %36 = vector.extract_strided_slice %24 {offsets = [0, 3], sizes = [8, 3], strides = [1, 1]} : vector<8x6xf32> to vector<8x3xf32>
    %cst_15 = arith.constant dense<0xFF800000> : vector<8xf32>
    %37 = vector.multi_reduction <maximumf>, %36, %cst_15 [1] : vector<8x3xf32> to vector<8xf32>
    %38 = vector.shape_cast %37 : vector<8xf32> to vector<8x1xf32>
    %39 = vector.broadcast %38 : vector<8x1xf32> to vector<8x3xf32>
    %40 = arith.subf %36, %39 : vector<8x3xf32>
    %41 = math.exp %40 : vector<8x3xf32>
    %cst_16 = arith.constant dense<0.000000e+00> : vector<8xf32>
    %42 = vector.multi_reduction <add>, %41, %cst_16 [1] : vector<8x3xf32> to vector<8xf32>
    %43 = vector.shape_cast %42 : vector<8xf32> to vector<8x1xf32>
    %44 = tpu.reciprocal %43 {approx = true} : vector<8x1xf32> -> vector<8x1xf32>
    %45 = vector.broadcast %44 : vector<8x1xf32> to vector<8x3xf32>
    %46 = arith.mulf %41, %45 : vector<8x3xf32>
    %cst_17 = arith.constant 0.000000e+00 : f32
    %47 = vector.broadcast %cst_17 : f32 to vector<8x116xf32>
    %48 = tpu.concatenate %24, %35, %46, %47 in 1 : vector<8x6xf32>, vector<8x3xf32>, vector<8x3xf32>, vector<8x116xf32> -> vector<8x128xf32>
    %c0_18 = arith.constant 0 : index
    %c0_19 = arith.constant 0 : index
    %49 = vector.load %arg10[%c0_18, %c0_19] : memref<8x128xf32, #tpu.memory_space<vmem>>, vector<8x128xf32>
    tpu.vector_store %arg10[%c0_18, %c0_19], %48 {strides = array<i32>} : memref<8x128xf32, #tpu.memory_space<vmem>>, vector<8x128xf32>,
    %cst_20 = arith.constant 0.000000e+00 : f32
    %50 = vector.broadcast %cst_20 : f32 to vector<8x256xf32>
    %cst_21 = arith.constant 0.000000e+00 : f32
    %51 = vector.broadcast %cst_21 : f32 to vector<8x128xf32>
    %52 = vector.extract_strided_slice %8 {offsets = [0, 128], sizes = [8, 128], strides = [1, 1]} : vector<8x896xbf16> to vector<8x128xbf16>
    %53 = vector.extract_strided_slice %8 {offsets = [0, 512], sizes = [8, 128], strides = [1, 1]} : vector<8x896xbf16> to vector<8x128xbf16>
    %c0_22 = arith.constant 0 : index
    %c0_23 = arith.constant 0 : index
    %c0_24 = arith.constant 0 : index
    %54 = vector.load %arg6[%c0_22, %c0_23, %c0_24] : memref<3x128x256xbf16, #tpu.memory_space<vmem>>, vector<1x128x256xbf16>
    %55 = vector.shape_cast %54 : vector<1x128x256xbf16> to vector<128x256xbf16>
    %cst_25 = arith.constant dense<0.000000e+00> : vector<8x256xf32>
    %56 = tpu.matmul %52, %55, %cst_25 {dimension_numbers = #tpu.dot_dimension_numbers<[1], [0], [0], [1], [0, 0, 1, 1], [], []>} : vector<8x128xbf16>, vector<128x256xbf16>, vector<8x256xf32> -> vector<8x256xf32>
    %c0_26 = arith.constant 0 : index
    %c0_27 = arith.constant 0 : index
    %c0_28 = arith.constant 0 : index
    %57 = vector.load %arg7[%c0_26, %c0_27, %c0_28] : memref<3x1x256xf32, #tpu.memory_space<vmem>>, vector<1x1x256xf32>
    %58 = vector.shape_cast %57 : vector<1x1x256xf32> to vector<1x256xf32>
    %59 = vector.broadcast %58 : vector<1x256xf32> to vector<8x256xf32>
    %60 = arith.addf %56, %59 : vector<8x256xf32>
    %c0_29 = arith.constant 0 : index
    %c0_30 = arith.constant 0 : index
    %c0_31 = arith.constant 0 : index
    %61 = vector.load %arg8[%c0_29, %c0_30, %c0_31] : memref<3x128x128xbf16, #tpu.memory_space<vmem>>, vector<1x128x128xbf16>
    %62 = vector.shape_cast %61 : vector<1x128x128xbf16> to vector<128x128xbf16>
    %cst_32 = arith.constant dense<0.000000e+00> : vector<8x128xf32>
    %63 = tpu.matmul %53, %62, %cst_32 {dimension_numbers = #tpu.dot_dimension_numbers<[1], [0], [0], [1], [0, 0, 1, 1], [], []>} : vector<8x128xbf16>, vector<128x128xbf16>, vector<8x128xf32> -> vector<8x128xf32>
    %c0_33 = arith.constant 0 : index
    %c0_34 = arith.constant 0 : index
    %c0_35 = arith.constant 0 : index
    %64 = vector.load %arg9[%c0_33, %c0_34, %c0_35] : memref<3x1x128xf32, #tpu.memory_space<vmem>>, vector<1x1x128xf32>
    %65 = vector.shape_cast %64 : vector<1x1x128xf32> to vector<1x128xf32>
    %66 = vector.broadcast %65 : vector<1x128xf32> to vector<8x128xf32>
    %67 = arith.addf %63, %66 : vector<8x128xf32>
    %68 = arith.truncf %60 : vector<8x256xf32> to vector<8x256xbf16>
    %c0_36 = arith.constant 0 : index
    %c0_37 = arith.constant 0 : index
    %c0_38 = arith.constant 0 : index
    %69 = vector.load %arg11[%c0_36, %c0_37, %c0_38] : memref<3x8x256xbf16, #tpu.memory_space<vmem>>, vector<1x8x256xbf16>
    %70 = vector.shape_cast %69 : vector<1x8x256xbf16> to vector<8x256xbf16>
    %71 = vector.shape_cast %68 : vector<8x256xbf16> to vector<1x8x256xbf16>
    tpu.vector_store %arg11[%c0_36, %c0_37, %c0_38], %71 {strides = array<i32>} : memref<3x8x256xbf16, #tpu.memory_space<vmem>>, vector<1x8x256xbf16>,
    %72 = arith.truncf %67 : vector<8x128xf32> to vector<8x128xbf16>
    %c0_39 = arith.constant 0 : index
    %c0_40 = arith.constant 0 : index
    %c0_41 = arith.constant 0 : index
    %73 = vector.load %arg12[%c0_39, %c0_40, %c0_41] : memref<3x8x128xbf16, #tpu.memory_space<vmem>>, vector<1x8x128xbf16>
    %74 = vector.shape_cast %73 : vector<1x8x128xbf16> to vector<8x128xbf16>
    %75 = vector.shape_cast %72 : vector<8x128xbf16> to vector<1x8x128xbf16>
    tpu.vector_store %arg12[%c0_39, %c0_40, %c0_41], %75 {strides = array<i32>} : memref<3x8x128xbf16, #tpu.memory_space<vmem>>, vector<1x8x128xbf16>,
    %76 = vector.extract_strided_slice %35 {offsets = [0, 0], sizes = [8, 1], strides = [1, 1]} : vector<8x3xf32> to vector<8x1xf32>
    %77 = vector.broadcast %76 : vector<8x1xf32> to vector<8x256xf32>
    %78 = arith.mulf %60, %77 : vector<8x256xf32>
    %79 = arith.addf %50, %78 : vector<8x256xf32>
    %80 = vector.extract_strided_slice %46 {offsets = [0, 0], sizes = [8, 1], strides = [1, 1]} : vector<8x3xf32> to vector<8x1xf32>
    %81 = vector.broadcast %80 : vector<8x1xf32> to vector<8x128xf32>
    %82 = arith.mulf %67, %81 : vector<8x128xf32>
    %83 = arith.addf %51, %82 : vector<8x128xf32>
    %84 = vector.extract_strided_slice %8 {offsets = [0, 256], sizes = [8, 128], strides = [1, 1]} : vector<8x896xbf16> to vector<8x128xbf16>
    %85 = vector.extract_strided_slice %8 {offsets = [0, 640], sizes = [8, 128], strides = [1, 1]} : vector<8x896xbf16> to vector<8x128xbf16>
    %c1 = arith.constant 1 : index
    %c0_42 = arith.constant 0 : index
    %c0_43 = arith.constant 0 : index
    %86 = vector.load %arg6[%c1, %c0_42, %c0_43] : memref<3x128x256xbf16, #tpu.memory_space<vmem>>, vector<1x128x256xbf16>
    %87 = vector.shape_cast %86 : vector<1x128x256xbf16> to vector<128x256xbf16>
    %cst_44 = arith.constant dense<0.000000e+00> : vector<8x256xf32>
    %88 = tpu.matmul %84, %87, %cst_44 {dimension_numbers = #tpu.dot_dimension_numbers<[1], [0], [0], [1], [0, 0, 1, 1], [], []>} : vector<8x128xbf16>, vector<128x256xbf16>, vector<8x256xf32> -> vector<8x256xf32>
    %c1_45 = arith.constant 1 : index
    %c0_46 = arith.constant 0 : index
    %c0_47 = arith.constant 0 : index
    %89 = vector.load %arg7[%c1_45, %c0_46, %c0_47] : memref<3x1x256xf32, #tpu.memory_space<vmem>>, vector<1x1x256xf32>
    %90 = vector.shape_cast %89 : vector<1x1x256xf32> to vector<1x256xf32>
    %91 = vector.broadcast %90 : vector<1x256xf32> to vector<8x256xf32>
    %92 = arith.addf %88, %91 : vector<8x256xf32>
    %c1_48 = arith.constant 1 : index
    %c0_49 = arith.constant 0 : index
    %c0_50 = arith.constant 0 : index
    %93 = vector.load %arg8[%c1_48, %c0_49, %c0_50] : memref<3x128x128xbf16, #tpu.memory_space<vmem>>, vector<1x128x128xbf16>
    %94 = vector.shape_cast %93 : vector<1x128x128xbf16> to vector<128x128xbf16>
    %cst_51 = arith.constant dense<0.000000e+00> : vector<8x128xf32>
    %95 = tpu.matmul %85, %94, %cst_51 {dimension_numbers = #tpu.dot_dimension_numbers<[1], [0], [0], [1], [0, 0, 1, 1], [], []>} : vector<8x128xbf16>, vector<128x128xbf16>, vector<8x128xf32> -> vector<8x128xf32>
    %c1_52 = arith.constant 1 : index
    %c0_53 = arith.constant 0 : index
    %c0_54 = arith.constant 0 : index
    %96 = vector.load %arg9[%c1_52, %c0_53, %c0_54] : memref<3x1x128xf32, #tpu.memory_space<vmem>>, vector<1x1x128xf32>
    %97 = vector.shape_cast %96 : vector<1x1x128xf32> to vector<1x128xf32>
    %98 = vector.broadcast %97 : vector<1x128xf32> to vector<8x128xf32>
    %99 = arith.addf %95, %98 : vector<8x128xf32>
    %100 = arith.truncf %92 : vector<8x256xf32> to vector<8x256xbf16>
    %c1_55 = arith.constant 1 : index
    %c0_56 = arith.constant 0 : index
    %c0_57 = arith.constant 0 : index
    %101 = vector.load %arg11[%c1_55, %c0_56, %c0_57] : memref<3x8x256xbf16, #tpu.memory_space<vmem>>, vector<1x8x256xbf16>
    %102 = vector.shape_cast %101 : vector<1x8x256xbf16> to vector<8x256xbf16>
    %103 = vector.shape_cast %100 : vector<8x256xbf16> to vector<1x8x256xbf16>
    tpu.vector_store %arg11[%c1_55, %c0_56, %c0_57], %103 {strides = array<i32>} : memref<3x8x256xbf16, #tpu.memory_space<vmem>>, vector<1x8x256xbf16>,
    %104 = arith.truncf %99 : vector<8x128xf32> to vector<8x128xbf16>
    %c1_58 = arith.constant 1 : index
    %c0_59 = arith.constant 0 : index
    %c0_60 = arith.constant 0 : index
    %105 = vector.load %arg12[%c1_58, %c0_59, %c0_60] : memref<3x8x128xbf16, #tpu.memory_space<vmem>>, vector<1x8x128xbf16>
    %106 = vector.shape_cast %105 : vector<1x8x128xbf16> to vector<8x128xbf16>
    %107 = vector.shape_cast %104 : vector<8x128xbf16> to vector<1x8x128xbf16>
    tpu.vector_store %arg12[%c1_58, %c0_59, %c0_60], %107 {strides = array<i32>} : memref<3x8x128xbf16, #tpu.memory_space<vmem>>, vector<1x8x128xbf16>,
    %108 = vector.extract_strided_slice %35 {offsets = [0, 1], sizes = [8, 1], strides = [1, 1]} : vector<8x3xf32> to vector<8x1xf32>
    %109 = vector.broadcast %108 : vector<8x1xf32> to vector<8x256xf32>
    %110 = arith.mulf %92, %109 : vector<8x256xf32>
    %111 = arith.addf %79, %110 : vector<8x256xf32>
    %112 = vector.extract_strided_slice %46 {offsets = [0, 1], sizes = [8, 1], strides = [1, 1]} : vector<8x3xf32> to vector<8x1xf32>
    %113 = vector.broadcast %112 : vector<8x1xf32> to vector<8x128xf32>
    %114 = arith.mulf %99, %113 : vector<8x128xf32>
    %115 = arith.addf %83, %114 : vector<8x128xf32>
    %116 = vector.extract_strided_slice %8 {offsets = [0, 384], sizes = [8, 128], strides = [1, 1]} : vector<8x896xbf16> to vector<8x128xbf16>
    %117 = vector.extract_strided_slice %8 {offsets = [0, 768], sizes = [8, 128], strides = [1, 1]} : vector<8x896xbf16> to vector<8x128xbf16>
    %c2 = arith.constant 2 : index
    %c0_61 = arith.constant 0 : index
    %c0_62 = arith.constant 0 : index
    %118 = vector.load %arg6[%c2, %c0_61, %c0_62] : memref<3x128x256xbf16, #tpu.memory_space<vmem>>, vector<1x128x256xbf16>
    %119 = vector.shape_cast %118 : vector<1x128x256xbf16> to vector<128x256xbf16>
    %cst_63 = arith.constant dense<0.000000e+00> : vector<8x256xf32>
    %120 = tpu.matmul %116, %119, %cst_63 {dimension_numbers = #tpu.dot_dimension_numbers<[1], [0], [0], [1], [0, 0, 1, 1], [], []>} : vector<8x128xbf16>, vector<128x256xbf16>, vector<8x256xf32> -> vector<8x256xf32>
    %c2_64 = arith.constant 2 : index
    %c0_65 = arith.constant 0 : index
    %c0_66 = arith.constant 0 : index
    %121 = vector.load %arg7[%c2_64, %c0_65, %c0_66] : memref<3x1x256xf32, #tpu.memory_space<vmem>>, vector<1x1x256xf32>
    %122 = vector.shape_cast %121 : vector<1x1x256xf32> to vector<1x256xf32>
    %123 = vector.broadcast %122 : vector<1x256xf32> to vector<8x256xf32>
    %124 = arith.addf %120, %123 : vector<8x256xf32>
    %c2_67 = arith.constant 2 : index
    %c0_68 = arith.constant 0 : index
    %c0_69 = arith.constant 0 : index
    %125 = vector.load %arg8[%c2_67, %c0_68, %c0_69] : memref<3x128x128xbf16, #tpu.memory_space<vmem>>, vector<1x128x128xbf16>
    %126 = vector.shape_cast %125 : vector<1x128x128xbf16> to vector<128x128xbf16>
    %cst_70 = arith.constant dense<0.000000e+00> : vector<8x128xf32>
    %127 = tpu.matmul %117, %126, %cst_70 {dimension_numbers = #tpu.dot_dimension_numbers<[1], [0], [0], [1], [0, 0, 1, 1], [], []>} : vector<8x128xbf16>, vector<128x128xbf16>, vector<8x128xf32> -> vector<8x128xf32>
    %c2_71 = arith.constant 2 : index
    %c0_72 = arith.constant 0 : index
    %c0_73 = arith.constant 0 : index
    %128 = vector.load %arg9[%c2_71, %c0_72, %c0_73] : memref<3x1x128xf32, #tpu.memory_space<vmem>>, vector<1x1x128xf32>
    %129 = vector.shape_cast %128 : vector<1x1x128xf32> to vector<1x128xf32>
    %130 = vector.broadcast %129 : vector<1x128xf32> to vector<8x128xf32>
    %131 = arith.addf %127, %130 : vector<8x128xf32>
    %132 = arith.truncf %124 : vector<8x256xf32> to vector<8x256xbf16>
    %c2_74 = arith.constant 2 : index
    %c0_75 = arith.constant 0 : index
    %c0_76 = arith.constant 0 : index
    %133 = vector.load %arg11[%c2_74, %c0_75, %c0_76] : memref<3x8x256xbf16, #tpu.memory_space<vmem>>, vector<1x8x256xbf16>
    %134 = vector.shape_cast %133 : vector<1x8x256xbf16> to vector<8x256xbf16>
    %135 = vector.shape_cast %132 : vector<8x256xbf16> to vector<1x8x256xbf16>
    tpu.vector_store %arg11[%c2_74, %c0_75, %c0_76], %135 {strides = array<i32>} : memref<3x8x256xbf16, #tpu.memory_space<vmem>>, vector<1x8x256xbf16>,
    %136 = arith.truncf %131 : vector<8x128xf32> to vector<8x128xbf16>
    %c2_77 = arith.constant 2 : index
    %c0_78 = arith.constant 0 : index
    %c0_79 = arith.constant 0 : index
    %137 = vector.load %arg12[%c2_77, %c0_78, %c0_79] : memref<3x8x128xbf16, #tpu.memory_space<vmem>>, vector<1x8x128xbf16>
    %138 = vector.shape_cast %137 : vector<1x8x128xbf16> to vector<8x128xbf16>
    %139 = vector.shape_cast %136 : vector<8x128xbf16> to vector<1x8x128xbf16>
    tpu.vector_store %arg12[%c2_77, %c0_78, %c0_79], %139 {strides = array<i32>} : memref<3x8x128xbf16, #tpu.memory_space<vmem>>, vector<1x8x128xbf16>,
    %140 = vector.extract_strided_slice %35 {offsets = [0, 2], sizes = [8, 1], strides = [1, 1]} : vector<8x3xf32> to vector<8x1xf32>
    %141 = vector.broadcast %140 : vector<8x1xf32> to vector<8x256xf32>
    %142 = arith.mulf %124, %141 : vector<8x256xf32>
    %143 = arith.addf %111, %142 : vector<8x256xf32>
    %144 = vector.extract_strided_slice %46 {offsets = [0, 2], sizes = [8, 1], strides = [1, 1]} : vector<8x3xf32> to vector<8x1xf32>
    %145 = vector.broadcast %144 : vector<8x1xf32> to vector<8x128xf32>
    %146 = arith.mulf %131, %145 : vector<8x128xf32>
    %147 = arith.addf %115, %146 : vector<8x128xf32>
    %c0_80 = arith.constant 0 : index
    %c0_81 = arith.constant 0 : index
    %148 = vector.load %arg13[%c0_80, %c0_81] : memref<8x256xf32, #tpu.memory_space<vmem>>, vector<8x256xf32>
    tpu.vector_store %arg13[%c0_80, %c0_81], %143 {strides = array<i32>} : memref<8x256xf32, #tpu.memory_space<vmem>>, vector<8x256xf32>,
    %c0_82 = arith.constant 0 : index
    %c0_83 = arith.constant 0 : index
    %149 = vector.load %arg14[%c0_82, %c0_83] : memref<8x128xf32, #tpu.memory_space<vmem>>, vector<8x128xf32>
    tpu.vector_store %arg14[%c0_82, %c0_83], %147 {strides = array<i32>} : memref<8x128xf32, #tpu.memory_space<vmem>>, vector<8x128xf32>,
    return
  }
  func.func @transform_0(%arg0: i32) -> (i32, i32) {
    %c0_i32 = arith.constant 0 : i32
    %c0_i32_0 = arith.constant 0 : i32
    return %arg0, %c0_i32 : i32, i32
  }
  func.func @transform_1(%arg0: i32) -> (i32, i32) {
    %c0_i32 = arith.constant 0 : i32
    %c0_i32_0 = arith.constant 0 : i32
    %c0_i32_1 = arith.constant 0 : i32
    return %c0_i32, %c0_i32_0 : i32, i32
  }
  func.func @transform_2(%arg0: i32) -> (i32, i32) {
    %c0_i32 = arith.constant 0 : i32
    %c0_i32_0 = arith.constant 0 : i32
    %c0_i32_1 = arith.constant 0 : i32
    return %c0_i32, %c0_i32_0 : i32, i32
  }
  func.func @transform_3(%arg0: i32) -> (i32, i32) {
    %c0_i32 = arith.constant 0 : i32
    %c0_i32_0 = arith.constant 0 : i32
    %c0_i32_1 = arith.constant 0 : i32
    return %c0_i32, %c0_i32_0 : i32, i32
  }
  func.func @transform_4(%arg0: i32) -> (i32, i32) {
    %c0_i32 = arith.constant 0 : i32
    %c0_i32_0 = arith.constant 0 : i32
    %c0_i32_1 = arith.constant 0 : i32
    return %c0_i32, %c0_i32_0 : i32, i32
  }
  func.func @transform_5(%arg0: i32) -> (i32, i32, i32) {
    %c0_i32 = arith.constant 0 : i32
    %c0_i32_0 = arith.constant 0 : i32
    %c0_i32_1 = arith.constant 0 : i32
    %c0_i32_2 = arith.constant 0 : i32
    return %c0_i32, %c0_i32_0, %c0_i32_1 : i32, i32, i32
  }
  func.func @transform_6(%arg0: i32) -> (i32, i32, i32) {
    %c0_i32 = arith.constant 0 : i32
    %c0_i32_0 = arith.constant 0 : i32
    %c0_i32_1 = arith.constant 0 : i32
    %c0_i32_2 = arith.constant 0 : i32
    return %c0_i32, %c0_i32_0, %c0_i32_1 : i32, i32, i32
  }
  func.func @transform_7(%arg0: i32) -> (i32, i32, i32) {
    %c0_i32 = arith.constant 0 : i32
    %c0_i32_0 = arith.constant 0 : i32
    %c0_i32_1 = arith.constant 0 : i32
    %c0_i32_2 = arith.constant 0 : i32
    return %c0_i32, %c0_i32_0, %c0_i32_1 : i32, i32, i32
  }
  func.func @transform_8(%arg0: i32) -> (i32, i32, i32) {
    %c0_i32 = arith.constant 0 : i32
    %c0_i32_0 = arith.constant 0 : i32
    %c0_i32_1 = arith.constant 0 : i32
    %c0_i32_2 = arith.constant 0 : i32
    return %c0_i32, %c0_i32_0, %c0_i32_1 : i32, i32, i32
  }
  func.func @transform_9(%arg0: i32) -> (i32, i32) {
    %c0_i32 = arith.constant 0 : i32
    %c0_i32_0 = arith.constant 0 : i32
    return %arg0, %c0_i32 : i32, i32
  }
  func.func @transform_10(%arg0: i32) -> (i32, i32, i32) {
    %c0_i32 = arith.constant 0 : i32
    %c0_i32_0 = arith.constant 0 : i32
    %c0_i32_1 = arith.constant 0 : i32
    return %c0_i32, %arg0, %c0_i32_0 : i32, i32, i32
  }
  func.func @transform_11(%arg0: i32) -> (i32, i32, i32) {
    %c0_i32 = arith.constant 0 : i32
    %c0_i32_0 = arith.constant 0 : i32
    %c0_i32_1 = arith.constant 0 : i32
    return %c0_i32, %arg0, %c0_i32_0 : i32, i32, i32
  }
  func.func @transform_12(%arg0: i32) -> (i32, i32) {
    %c0_i32 = arith.constant 0 : i32
    %c0_i32_0 = arith.constant 0 : i32
    return %arg0, %c0_i32 : i32, i32
  }
  func.func @transform_13(%arg0: i32) -> (i32, i32) {
    %c0_i32 = arith.constant 0 : i32
    %c0_i32_0 = arith.constant 0 : i32
    return %arg0, %c0_i32 : i32, i32
  }
}

</mosaic_0001>

<llo_original>
// kernel: moe_layer_forward.1
$region0: #{moe_layer_forward.1}
  #allocation0 [shape = 'u32[]', space=smem, size = 0x4, offset = 0x4, fixed_abs, tag = 'smem constant byte address 0x4 - core index']
  #allocation1 [shape = 'u32[144,128]{1,0:T(1,128)}', space=vmem, size = 0x12000, scoped, tag = 'internal scratch']
  %s0 = inlined_call_operand.vmem [shape: bf16[8,32], index: 0, kind: input, shape index: {}]
  %s1 = inlined_call_operand.vmem [shape: bf16[32,896], index: 1, kind: input, shape index: {}]
  %s2 = inlined_call_operand.vmem [shape: f32[1,896], index: 2, kind: input, shape index: {}]
  %s3 = inlined_call_operand.vmem [shape: bf16[128,6], index: 3, kind: input, shape index: {}]
  %s4 = inlined_call_operand.vmem [shape: f32[1,6], index: 4, kind: input, shape index: {}]
  %s5 = inlined_call_operand.vmem [shape: bf16[3,128,256], index: 5, kind: input, shape index: {}]
  %s6 = inlined_call_operand.vmem [shape: f32[3,1,256], index: 6, kind: input, shape index: {}]
  %s7 = inlined_call_operand.vmem [shape: bf16[3,128,128], index: 7, kind: input, shape index: {}]
  %s8 = inlined_call_operand.vmem [shape: f32[3,1,128], index: 8, kind: input, shape index: {}]
  %s9 = inlined_call_operand.vmem [shape: f32[8,128], index: 9, kind: output, shape index: {0}]
  %s10 = inlined_call_operand.hbm [shape: bf16[3,8,256], index: 10, kind: output, shape index: {1}]
  %s11 = inlined_call_operand.hbm [shape: bf16[3,8,128], index: 11, kind: output, shape index: {2}]
  %s12 = inlined_call_operand.hbm [shape: f32[8,256], index: 12, kind: output, shape index: {3}]
  %s13 = inlined_call_operand.hbm [shape: f32[8,128], index: 13, kind: output, shape index: {4}]
  %14 = xla_tuple %s9, %s10, %s11, %s12, %s13
  %s15 = sld [smem:[#allocation0]]
  $region78: #{moe_layer_forward.1} parent=0
    _
  %s17 = ssub.s32 1, %s15
  %s18 = scalar_select 0, %s17, %s15
  $region1: #{moe_layer_forward.1} parent=0
    #allocation2 [shape = 'u8[12288]{0}', space=vmem, size = 0x3000, scoped, tag = 'output window, operand 1, single buffered']
    #allocation3 [shape = 's32[1]{0}', space=sflag, size = 0x4, scoped, tag = 'scoped memory for moe_layer_forward.1']
    #allocation4 [shape = 'u8[6144]{0}', space=vmem, size = 0x1800, scoped, tag = 'output window, operand 2, single buffered']
    #allocation5 [shape = 's32[1]{0}', space=sflag, size = 0x4, scoped, tag = 'scoped memory for moe_layer_forward.1']
    #allocation6 [shape = 'u8[8192]{0}', space=vmem, size = 0x2000, scoped, tag = 'output window, operand 3, single buffered']
    #allocation7 [shape = 'u8[4096]{0}', space=vmem, size = 0x1000, scoped, tag = 'output window, operand 4, single buffered']
    #allocation8 [shape = 's32[1]{0}', space=sflag, size = 0x4, scoped, tag = 'scoped memory for moe_layer_forward.1']
    %19 = vsyncpa [#allocation3], 0
    %20 = vsyncpa [#allocation5], 0
    %21 = vsyncpa [#allocation8], 0
    // Predicated region
    $region2: #{moe_layer_forward.1} parent=1 // pred_check
      _
    $region3: #{moe_layer_forward.1} parent=1 // pred_check_branch
      %23 = sbr.rel (0) target = $region5
    $region4: #{moe_layer_forward.1} parent=1 // pred_region
      _
    $region5: #{moe_layer_forward.1} parent=1 // pred_fallthru
      _
    // Predicated region
    $region6: #{moe_layer_forward.1} parent=1 // pred_check
      _
    $region7: #{moe_layer_forward.1} parent=1 // pred_check_branch
      %25 = sbr.rel (0) target = $region9
    $region8: #{moe_layer_forward.1} parent=1 // pred_region
      _
    $region9: #{moe_layer_forward.1} parent=1 // pred_fallthru
      _
    // Predicated region
    $region10: #{moe_layer_forward.1} parent=1 // pred_check
      _
    $region11: #{moe_layer_forward.1} parent=1 // pred_check_branch
      %27 = sbr.rel (0) target = $region13
    $region12: #{moe_layer_forward.1} parent=1 // pred_region
      _
    $region13: #{moe_layer_forward.1} parent=1 // pred_fallthru
      _
    // Predicated region
    $region14: #{moe_layer_forward.1} parent=1 // pred_check
      _
    $region15: #{moe_layer_forward.1} parent=1 // pred_check_branch
      %29 = sbr.rel (0) target = $region17
    $region16: #{moe_layer_forward.1} parent=1 // pred_region
      _
    $region17: #{moe_layer_forward.1} parent=1 // pred_fallthru
      _
    // Predicated region
    $region18: #{moe_layer_forward.1} parent=1 // pred_check
      _
    $region19: #{moe_layer_forward.1} parent=1 // pred_check_branch
      %31 = sbr.rel (0) target = $region21
    $region20: #{moe_layer_forward.1} parent=1 // pred_region
      _
    $region21: #{moe_layer_forward.1} parent=1 // pred_fallthru
      _
    // Predicated region
    $region22: #{moe_layer_forward.1} parent=1 // pred_check
      _
    $region23: #{moe_layer_forward.1} parent=1 // pred_check_branch
      %33 = sbr.rel (0) target = $region25
    $region24: #{moe_layer_forward.1} parent=1 // pred_region
      _
    $region25: #{moe_layer_forward.1} parent=1 // pred_fallthru
      _
    // Predicated region
    $region26: #{moe_layer_forward.1} parent=1 // pred_check
      _
    $region27: #{moe_layer_forward.1} parent=1 // pred_check_branch
      %35 = sbr.rel (0) target = $region29
    $region28: #{moe_layer_forward.1} parent=1 // pred_region
      _
    $region29: #{moe_layer_forward.1} parent=1 // pred_fallthru
      _
    // Predicated region
    $region30: #{moe_layer_forward.1} parent=1 // pred_check
      _
    $region31: #{moe_layer_forward.1} parent=1 // pred_check_branch
      %37 = sbr.rel (0) target = $region33
    $region32: #{moe_layer_forward.1} parent=1 // pred_region
      _
    $region33: #{moe_layer_forward.1} parent=1 // pred_fallthru
      _
    // Predicated region
    $region34: #{moe_layer_forward.1} parent=1 // pred_check
      _
    $region35: #{moe_layer_forward.1} parent=1 // pred_check_branch
      %39 = sbr.rel (0) target = $region37
    $region36: #{moe_layer_forward.1} parent=1 // pred_region
      _
    $region37: #{moe_layer_forward.1} parent=1 // pred_fallthru
      _
    %v41 = vld [vmem:[%s0] sm:$0xf]
    %v42 = vld [vmem:[%s1] sm:$0xff]
    %v43 = vld [vmem:[%s1 + $0x8] sm:$0xff]
    %v44 = vld [vmem:[%s1 + $0x10] sm:$0xff]
    %v45 = vld [vmem:[%s1 + $0x18] sm:$0xf]
    %v46 = vld [vmem:[%s1 + $0x1c] sm:$0xff]
    %v47 = vld [vmem:[%s1 + $0x24] sm:$0xff]
    %v48 = vld [vmem:[%s1 + $0x2c] sm:$0xff]
    %v49 = vld [vmem:[%s1 + $0x34] sm:$0xf]
    %v50 = vld [vmem:[%s1 + $0x38] sm:$0xff]
    %v51 = vld [vmem:[%s1 + $0x40] sm:$0xff]
    %v52 = vld [vmem:[%s1 + $0x48] sm:$0xff]
    %v53 = vld [vmem:[%s1 + $0x50] sm:$0xf]
    %v54 = vld [vmem:[%s1 + $0x54] sm:$0xff]
    %v55 = vld [vmem:[%s1 + $0x5c] sm:$0xff]
    %v56 = vld [vmem:[%s1 + $0x64] sm:$0xff]
    %v57 = vld [vmem:[%s1 + $0x6c] sm:$0xf]
    %v58 = vld [vmem:[%s2] sm:$0xff]
    %v60 = vlaneseq
    %v61 = vshrl.u32 %v60, 7
    %v62 = vsub.s32 0, %v61
    %v63 = vrot.slane %v58, %v62
    %v64 = vlaneseq
    %v65 = vshrl.u32 %v64, 7
    %v66 = vsub.s32 1, %v65
    %v67 = vrot.slane %v58, %v66
    %v68 = vlaneseq
    %v69 = vshrl.u32 %v68, 7
    %v70 = vsub.s32 2, %v69
    %v71 = vrot.slane %v58, %v70
    %v72 = vlaneseq
    %v73 = vshrl.u32 %v72, 7
    %v74 = vsub.s32 3, %v73
    %v75 = vrot.slane %v58, %v74
    %v76 = vlaneseq
    %v77 = vshrl.u32 %v76, 7
    %v78 = vsub.s32 4, %v77
    %v79 = vrot.slane %v58, %v78
    %v80 = vlaneseq
    %v81 = vshrl.u32 %v80, 7
    %v82 = vsub.s32 5, %v81
    %v83 = vrot.slane %v58, %v82
    %v84 = vlaneseq
    %v85 = vshrl.u32 %v84, 7
    %v86 = vsub.s32 6, %v85
    %v87 = vrot.slane %v58, %v86
    %v111 = vunpack.c.l.b16 %v42
    %v112 = vunpack.c.h.b16 %v42
    %v113 = vunpack.c.l.b16 %v43
    %v114 = vunpack.c.h.b16 %v43
    %v115 = vunpack.c.l.b16 %v44
    %v116 = vunpack.c.h.b16 %v44
    %v117 = vunpack.c.l.b16 %v45
    %v118 = vunpack.c.l.b16 %v46
    %v119 = vunpack.c.h.b16 %v46
    %v120 = vunpack.c.l.b16 %v47
    %v121 = vunpack.c.h.b16 %v47
    %v122 = vunpack.c.l.b16 %v48
    %v123 = vunpack.c.h.b16 %v48
    %v124 = vunpack.c.l.b16 %v49
    %v125 = vunpack.c.l.b16 %v50
    %v126 = vunpack.c.h.b16 %v50
    %v127 = vunpack.c.l.b16 %v51
    %v128 = vunpack.c.h.b16 %v51
    %v129 = vunpack.c.l.b16 %v52
    %v130 = vunpack.c.h.b16 %v52
    %v131 = vunpack.c.l.b16 %v53
    %v132 = vunpack.c.l.b16 %v54
    %v133 = vunpack.c.h.b16 %v54
    %v134 = vunpack.c.l.b16 %v55
    %v135 = vunpack.c.h.b16 %v55
    %v136 = vunpack.c.l.b16 %v56
    %v137 = vunpack.c.h.b16 %v56
    %v138 = vunpack.c.l.b16 %v57
    %v139 = vpack.c.b16 %v118, %v111
    %v140 = vpack.c.b16 %v119, %v112
    %v141 = vpack.c.b16 %v120, %v113
    %v142 = vpack.c.b16 %v121, %v114
    %v143 = vpack.c.b16 %v122, %v115
    %v144 = vpack.c.b16 %v123, %v116
    %v145 = vpack.c.b16 %v124, %v117
    %v146 = vpack.c.b16 %v132, %v125
    %v147 = vpack.c.b16 %v133, %v126
    %v148 = vpack.c.b16 %v134, %v127
    %v149 = vpack.c.b16 %v135, %v128
    %v150 = vpack.c.b16 %v136, %v129
    %v151 = vpack.c.b16 %v137, %v130
    %v152 = vpack.c.b16 %v138, %v131
    %vm167 = vcmask 261120
    %v169 = vsel %vm167, %v41, 0
    %171 = vmatprep.subr.bf16.mxu0 %v140
    %172 = vmatpush1.bf16.msra.mxu0 %v139
    %173 = vmatprep.subr.bf16.mxu0 %v147
    %174 = vmatpush1.bf16.msra.mxu0 %v146
    %175 = vmatprep.subr.bf16.mxu0 0
    %176 = vmatpush1.bf16.msra.mxu0 0
    %177 = vmatprep.subr.bf16.mxu0 0
    %178 = vmatpush1.bf16.msra.mxu0 0
    %179 = vmatprep.subr.bf16.mxu0 0
    %180 = vmatpush1.bf16.msra.mxu0 0
    %181 = vmatprep.subr.bf16.mxu0 0
    %182 = vmatpush1.bf16.msra.mxu0 0
    %183 = vmatprep.subr.bf16.mxu0 0
    %184 = vmatpush1.bf16.msra.mxu0 0
    %185 = vmatprep.subr.bf16.mxu0 0
    %186 = vmatpush1.bf16.msra.mxu0 0
    %187 = vmatprep.subr.bf16.mxu0 0
    %188 = vmatpush1.bf16.msra.mxu0 0
    %189 = vmatprep.subr.bf16.mxu0 0
    %190 = vmatpush1.bf16.msra.mxu0 0
    %191 = vmatprep.subr.bf16.mxu0 0
    %192 = vmatpush1.bf16.msra.mxu0 0
    %193 = vmatprep.subr.bf16.mxu0 0
    %194 = vmatpush1.bf16.msra.mxu0 0
    %195 = vmatprep.subr.bf16.mxu0 0
    %196 = vmatpush1.bf16.msra.mxu0 0
    %197 = vmatprep.subr.bf16.mxu0 0
    %198 = vmatpush1.bf16.msra.mxu0 0
    %199 = vmatprep.subr.bf16.mxu0 0
    %200 = vmatpush1.bf16.msra.mxu0 0
    %201 = vmatprep.subr.bf16.mxu0 0
    %202 = vmatpush1.bf16.msra.mxu0 0
    %203 = vmatprep.mubr.bf16.mxu0 0
    %204 = vmatmul.mubr.bf16.gmra.mrb[0].mxu0 %v169
    %v205 = vpop.f32.mrb[0].mxu0
    %v206 = vadd.f32 %v63, %v205
    %v207 = vpop.f32.mrb[0].mxu0
    %v208 = vadd.f32 %v67, %v207
    %v209 = vpop.f32.mrb[0].mxu0
    %v210 = vpop.f32.mrb[0].mxu0
    %211 = vdwg.mxu0
    %212 = vmatprep.subr.bf16.mxu0 %v142
    %213 = vmatpush1.bf16.msra.mxu0 %v141
    %214 = vmatprep.subr.bf16.mxu0 %v149
    %215 = vmatpush1.bf16.msra.mxu0 %v148
    %216 = vmatprep.subr.bf16.mxu0 0
    %217 = vmatpush1.bf16.msra.mxu0 0
    %218 = vmatprep.subr.bf16.mxu0 0
    %219 = vmatpush1.bf16.msra.mxu0 0
    %220 = vmatprep.subr.bf16.mxu0 0
    %221 = vmatpush1.bf16.msra.mxu0 0
    %222 = vmatprep.subr.bf16.mxu0 0
    %223 = vmatpush1.bf16.msra.mxu0 0
    %224 = vmatprep.subr.bf16.mxu0 0
    %225 = vmatpush1.bf16.msra.mxu0 0
    %226 = vmatprep.subr.bf16.mxu0 0
    %227 = vmatpush1.bf16.msra.mxu0 0
    %228 = vmatprep.subr.bf16.mxu0 0
    %229 = vmatpush1.bf16.msra.mxu0 0
    %230 = vmatprep.subr.bf16.mxu0 0
    %231 = vmatpush1.bf16.msra.mxu0 0
    %232 = vmatprep.subr.bf16.mxu0 0
    %233 = vmatpush1.bf16.msra.mxu0 0
    %234 = vmatprep.subr.bf16.mxu0 0
    %235 = vmatpush1.bf16.msra.mxu0 0
    %236 = vmatprep.subr.bf16.mxu0 0
    %237 = vmatpush1.bf16.msra.mxu0 0
    %238 = vmatprep.subr.bf16.mxu0 0
    %239 = vmatpush1.bf16.msra.mxu0 0
    %240 = vmatprep.subr.bf16.mxu0 0
    %241 = vmatpush1.bf16.msra.mxu0 0
    %242 = vmatprep.subr.bf16.mxu0 0
    %243 = vmatpush1.bf16.msra.mxu0 0
    %244 = vmatprep.mubr.bf16.mxu0 0
    %245 = vmatmul.mubr.bf16.gmra.mrb[0].mxu0 %v169
    %v246 = vpop.f32.mrb[0].mxu0
    %v247 = vadd.f32 %v71, %v246
    %v248 = vpop.f32.mrb[0].mxu0
    %v249 = vadd.f32 %v75, %v248
    %v250 = vpop.f32.mrb[0].mxu0
    %v251 = vpop.f32.mrb[0].mxu0
    %252 = vdwg.mxu0
    %253 = vmatprep.subr.bf16.mxu0 %v144
    %254 = vmatpush1.bf16.msra.mxu0 %v143
    %255 = vmatprep.subr.bf16.mxu0 %v151
    %256 = vmatpush1.bf16.msra.mxu0 %v150
    %257 = vmatprep.subr.bf16.mxu0 0
    %258 = vmatpush1.bf16.msra.mxu0 0
    %259 = vmatprep.subr.bf16.mxu0 0
    %260 = vmatpush1.bf16.msra.mxu0 0
    %261 = vmatprep.subr.bf16.mxu0 0
    %262 = vmatpush1.bf16.msra.mxu0 0
    %263 = vmatprep.subr.bf16.mxu0 0
    %264 = vmatpush1.bf16.msra.mxu0 0
    %265 = vmatprep.subr.bf16.mxu0 0
    %266 = vmatpush1.bf16.msra.mxu0 0
    %267 = vmatprep.subr.bf16.mxu0 0
    %268 = vmatpush1.bf16.msra.mxu0 0
    %269 = vmatprep.subr.bf16.mxu0 0
    %270 = vmatpush1.bf16.msra.mxu0 0
    %271 = vmatprep.subr.bf16.mxu0 0
    %272 = vmatpush1.bf16.msra.mxu0 0
    %273 = vmatprep.subr.bf16.mxu0 0
    %274 = vmatpush1.bf16.msra.mxu0 0
    %275 = vmatprep.subr.bf16.mxu0 0
    %276 = vmatpush1.bf16.msra.mxu0 0
    %277 = vmatprep.subr.bf16.mxu0 0
    %278 = vmatpush1.bf16.msra.mxu0 0
    %279 = vmatprep.subr.bf16.mxu0 0
    %280 = vmatpush1.bf16.msra.mxu0 0
    %281 = vmatprep.subr.bf16.mxu0 0
    %282 = vmatpush1.bf16.msra.mxu0 0
    %283 = vmatprep.subr.bf16.mxu0 0
    %284 = vmatpush1.bf16.msra.mxu0 0
    %285 = vmatprep.mubr.bf16.mxu0 0
    %286 = vmatmul.mubr.bf16.gmra.mrb[0].mxu0 %v169
    %v287 = vpop.f32.mrb[0].mxu0
    %v288 = vadd.f32 %v79, %v287
    %v289 = vpop.f32.mrb[0].mxu0
    %v290 = vadd.f32 %v83, %v289
    %v291 = vpop.f32.mrb[0].mxu0
    %v292 = vpop.f32.mrb[0].mxu0
    %293 = vdwg.mxu0
    %294 = vmatprep.subr.bf16.mxu0 0
    %295 = vmatpush1.bf16.msra.mxu0 %v145
    %296 = vmatprep.subr.bf16.mxu0 0
    %297 = vmatpush1.bf16.msra.mxu0 %v152
    %298 = vmatprep.subr.bf16.mxu0 0
    %299 = vmatpush1.bf16.msra.mxu0 0
    %300 = vmatprep.subr.bf16.mxu0 0
    %301 = vmatpush1.bf16.msra.mxu0 0
    %302 = vmatprep.subr.bf16.mxu0 0
    %303 = vmatpush1.bf16.msra.mxu0 0
    %304 = vmatprep.subr.bf16.mxu0 0
    %305 = vmatpush1.bf16.msra.mxu0 0
    %306 = vmatprep.subr.bf16.mxu0 0
    %307 = vmatpush1.bf16.msra.mxu0 0
    %308 = vmatprep.subr.bf16.mxu0 0
    %309 = vmatpush1.bf16.msra.mxu0 0
    %310 = vmatprep.subr.bf16.mxu0 0
    %311 = vmatpush1.bf16.msra.mxu0 0
    %312 = vmatprep.subr.bf16.mxu0 0
    %313 = vmatpush1.bf16.msra.mxu0 0
    %314 = vmatprep.subr.bf16.mxu0 0
    %315 = vmatpush1.bf16.msra.mxu0 0
    %316 = vmatprep.subr.bf16.mxu0 0
    %317 = vmatpush1.bf16.msra.mxu0 0
    %318 = vmatprep.subr.bf16.mxu0 0
    %319 = vmatpush1.bf16.msra.mxu0 0
    %320 = vmatprep.subr.bf16.mxu0 0
    %321 = vmatpush1.bf16.msra.mxu0 0
    %322 = vmatprep.subr.bf16.mxu0 0
    %323 = vmatpush1.bf16.msra.mxu0 0
    %324 = vmatprep.subr.bf16.mxu0 0
    %325 = vmatpush1.bf16.msra.mxu0 0
    %326 = vmatprep.mubr.bf16.mxu0 0
    %327 = vmatmul.mubr.bf16.gmra.mrb[0].mxu0 %v169
    %v328 = vpop.f32.mrb[0].mxu0
    %v329 = vadd.f32 %v87, %v328
    %v330 = vpop.f32.mrb[0].mxu0
    %v331 = vpop.f32.mrb[0].mxu0
    %v332 = vpop.f32.mrb[0].mxu0
    %333 = vdwg.mxu0
    %v334 = vmax.f32 %v206, 0.0
    %v335 = vmax.f32 %v208, 0.0
    %v336 = vmax.f32 %v247, 0.0
    %v337 = vmax.f32 %v249, 0.0
    %v338 = vmax.f32 %v288, 0.0
    %v339 = vmax.f32 %v290, 0.0
    %v340 = vmax.f32 %v329, 0.0
    %v341 = vpack.c.bf16 %v334, %v334
    %v342 = vpack.c.bf16 %v335, %v335
    %v343 = vpack.c.bf16 %v336, %v336
    %v344 = vpack.c.bf16 %v337, %v337
    %v345 = vpack.c.bf16 %v338, %v338
    %v346 = vpack.c.bf16 %v339, %v339
    %v347 = vpack.c.bf16 %v340, %v340
    %v348 = vld [vmem:[%s3] sm:$0xf]
    %v349 = vld [vmem:[%s3 + $0x4] sm:$0xf]
    %v350 = vld [vmem:[%s3 + $0x8] sm:$0xf]
    %v351 = vld [vmem:[%s3 + $0xc] sm:$0xf]
    %v352 = vld [vmem:[%s3 + $0x10] sm:$0xf]
    %v353 = vld [vmem:[%s3 + $0x14] sm:$0xf]
    %v354 = vld [vmem:[%s3 + $0x18] sm:$0xf]
    %v355 = vld [vmem:[%s3 + $0x1c] sm:$0xf]
    %v356 = vld [vmem:[%s3 + $0x20] sm:$0xf]
    %v357 = vld [vmem:[%s3 + $0x24] sm:$0xf]
    %v358 = vld [vmem:[%s3 + $0x28] sm:$0xf]
    %v359 = vld [vmem:[%s3 + $0x2c] sm:$0xf]
    %v360 = vld [vmem:[%s3 + $0x30] sm:$0xf]
    %v361 = vld [vmem:[%s3 + $0x34] sm:$0xf]
    %v362 = vld [vmem:[%s3 + $0x38] sm:$0xf]
    %v363 = vld [vmem:[%s3 + $0x3c] sm:$0xf]
    %v364 = vld [vmem:[%s4] sm:$0x1]
    %v366 = vlaneseq
    %v367 = vshrl.u32 %v366, 7
    %v368 = vsub.s32 0, %v367
    %v369 = vrot.slane %v364, %v368
    %v387 = vunpack.c.l.b16 %v348
    %v388 = vunpack.c.l.b16 %v349
    %v389 = vunpack.c.l.b16 %v350
    %v390 = vunpack.c.l.b16 %v351
    %v391 = vunpack.c.l.b16 %v352
    %v392 = vunpack.c.l.b16 %v353
    %v393 = vunpack.c.l.b16 %v354
    %v394 = vunpack.c.l.b16 %v355
    %v395 = vunpack.c.l.b16 %v356
    %v396 = vunpack.c.l.b16 %v357
    %v397 = vunpack.c.l.b16 %v358
    %v398 = vunpack.c.l.b16 %v359
    %v399 = vunpack.c.l.b16 %v360
    %v400 = vunpack.c.l.b16 %v361
    %v401 = vunpack.c.l.b16 %v362
    %v402 = vunpack.c.l.b16 %v363
    %v403 = vpack.c.b16 %v388, %v387
    %v404 = vpack.c.b16 %v390, %v389
    %v405 = vpack.c.b16 %v392, %v391
    %v406 = vpack.c.b16 %v394, %v393
    %v407 = vpack.c.b16 %v396, %v395
    %v408 = vpack.c.b16 %v398, %v397
    %v409 = vpack.c.b16 %v400, %v399
    %v410 = vpack.c.b16 %v402, %v401
    %419 = vmatprep.subr.bf16.mxu0 0
    %420 = vmatpush1.bf16.msra.mxu0 %v403
    %421 = vmatprep.subr.bf16.mxu0 0
    %422 = vmatpush1.bf16.msra.mxu0 %v404
    %423 = vmatprep.subr.bf16.mxu0 0
    %424 = vmatpush1.bf16.msra.mxu0 %v405
    %425 = vmatprep.subr.bf16.mxu0 0
    %426 = vmatpush1.bf16.msra.mxu0 %v406
    %427 = vmatprep.subr.bf16.mxu0 0
    %428 = vmatpush1.bf16.msra.mxu0 %v407
    %429 = vmatprep.subr.bf16.mxu0 0
    %430 = vmatpush1.bf16.msra.mxu0 %v408
    %431 = vmatprep.subr.bf16.mxu0 0
    %432 = vmatpush1.bf16.msra.mxu0 %v409
    %433 = vmatprep.subr.bf16.mxu0 0
    %434 = vmatpush1.bf16.msra.mxu0 %v410
    %435 = vmatprep.subr.bf16.mxu0 0
    %436 = vmatpush1.bf16.msra.mxu0 0
    %437 = vmatprep.subr.bf16.mxu0 0
    %438 = vmatpush1.bf16.msra.mxu0 0
    %439 = vmatprep.subr.bf16.mxu0 0
    %440 = vmatpush1.bf16.msra.mxu0 0
    %441 = vmatprep.subr.bf16.mxu0 0
    %442 = vmatpush1.bf16.msra.mxu0 0
    %443 = vmatprep.subr.bf16.mxu0 0
    %444 = vmatpush1.bf16.msra.mxu0 0
    %445 = vmatprep.subr.bf16.mxu0 0
    %446 = vmatpush1.bf16.msra.mxu0 0
    %447 = vmatprep.subr.bf16.mxu0 0
    %448 = vmatpush1.bf16.msra.mxu0 0
    %449 = vmatprep.subr.bf16.mxu0 0
    %450 = vmatpush1.bf16.msra.mxu0 0
    %451 = vmatprep.mubr.bf16.mxu0 0
    %452 = vmatmul.mubr.bf16.gmra.mrb[0].mxu0 %v341
    %v453 = vpop.f32.mrb[0].mxu0
    %v454 = vadd.f32 %v369, %v453
    %v455 = vpop.f32.mrb[0].mxu0
    %v456 = vpop.f32.mrb[0].mxu0
    %v457 = vpop.f32.mrb[0].mxu0
    %458 = vdwg.mxu0
    %vm459 = vcmask 48128
    %v460 = vsel %vm459, %v454, -inf
    %461 = vmax.xlane.f32.xlu0 %v460
    %v462 = vpop.xlane.xlu0 %461
    %v463 = vsub.f32 %v454, %v462
    %v464 = vmul.f32 %v463, 1.442695
    %v465 = vpow.pop %v464
    %v466 = vsel %vm459, %v465, 0.0
    %467 = vadd.xlane.f32.xlu0 %v466
    %v468 = vpop.xlane.xlu0 %467
    %v469 = vrcp.pop %v468
    %v470 = vmul.f32 %v465, %v469
    %vm471 = vcmask 23552
    %v472 = vsel %vm471, %v470, -inf
    %473 = vmax.xlane.f32.xlu0 %v472
    %v474 = vpop.xlane.xlu0 %473
    %v475 = vsub.f32 %v470, %v474
    %v476 = vmul.f32 %v475, 1.442695
    %v477 = vpow.pop %v476
    %v478 = vsel %vm471, %v477, 0.0
    %479 = vadd.xlane.f32.xlu0 %v478
    %v480 = vpop.xlane.xlu0 %479
    %v481 = vrcp.pop %v480
    %v482 = vmul.f32 %v477, %v481
    %vm483 = vcmask 48152
    %v484 = vsel %vm483, %v470, -inf
    %485 = vmax.xlane.f32.xlu0 %v484
    %v486 = vpop.xlane.xlu0 %485
    %v487 = vsub.f32 %v470, %v486
    %v488 = vmul.f32 %v487, 1.442695
    %v489 = vpow.pop %v488
    %491 = vrot.lane.b32.xlu0 %v489, 125
    %v492 = vpop.permute.xlu0 %491
    %v494 = vsel %vm471, %v492, 0.0
    %495 = vadd.xlane.f32.xlu0 %v494
    %v496 = vpop.xlane.xlu0 %495
    %v497 = vrcp.pop %v496
    %v498 = vmul.f32 %v489, %v497
    %500 = vrot.lane.b32.xlu0 %v482, 6
    %v501 = vpop.permute.xlu0 %500
    %504 = vrot.lane.b32.xlu0 %v498, 6
    %v505 = vpop.permute.xlu0 %504
    %v507 = vsel %vm459, %v470, %v501
    %vm508 = vcmask 72704
    %v509 = vsel %vm508, %v507, %v505
    %vm510 = vcmask 97280
    %v511 = vsel %vm510, %v509, 0.0
    %512 = vst [vmem:[%s9] sm:$0xff] %v511
    %v513 = vld [vmem:[%s5] sm:$0xff]
    %v514 = vld [vmem:[%s5 + $0x8] sm:$0xff]
    %v515 = vld [vmem:[%s5 + $0x10] sm:$0xff]
    %v516 = vld [vmem:[%s5 + $0x18] sm:$0xff]
    %v517 = vld [vmem:[%s5 + $0x20] sm:$0xff]
    %v518 = vld [vmem:[%s5 + $0x28] sm:$0xff]
    %v519 = vld [vmem:[%s5 + $0x30] sm:$0xff]
    %v520 = vld [vmem:[%s5 + $0x38] sm:$0xff]
    %v521 = vld [vmem:[%s5 + $0x40] sm:$0xff]
    %v522 = vld [vmem:[%s5 + $0x48] sm:$0xff]
    %v523 = vld [vmem:[%s5 + $0x50] sm:$0xff]
    %v524 = vld [vmem:[%s5 + $0x58] sm:$0xff]
    %v525 = vld [vmem:[%s5 + $0x60] sm:$0xff]
    %v526 = vld [vmem:[%s5 + $0x68] sm:$0xff]
    %v527 = vld [vmem:[%s5 + $0x70] sm:$0xff]
    %v528 = vld [vmem:[%s5 + $0x78] sm:$0xff]
    %v529 = vld [vmem:[%s6] sm:$0x3]
    %v531 = vlaneseq
    %v532 = vshrl.u32 %v531, 7
    %v533 = vsub.s32 0, %v532
    %v534 = vrot.slane %v529, %v533
    %v535 = vlaneseq
    %v536 = vshrl.u32 %v535, 7
    %v537 = vsub.s32 1, %v536
    %v538 = vrot.slane %v529, %v537
    %v557 = vunpack.c.l.b16 %v513
    %v558 = vunpack.c.h.b16 %v513
    %v559 = vunpack.c.l.b16 %v514
    %v560 = vunpack.c.h.b16 %v514
    %v561 = vunpack.c.l.b16 %v515
    %v562 = vunpack.c.h.b16 %v515
    %v563 = vunpack.c.l.b16 %v516
    %v564 = vunpack.c.h.b16 %v516
    %v565 = vunpack.c.l.b16 %v517
    %v566 = vunpack.c.h.b16 %v517
    %v567 = vunpack.c.l.b16 %v518
    %v568 = vunpack.c.h.b16 %v518
    %v569 = vunpack.c.l.b16 %v519
    %v570 = vunpack.c.h.b16 %v519
    %v571 = vunpack.c.l.b16 %v520
    %v572 = vunpack.c.h.b16 %v520
    %v573 = vunpack.c.l.b16 %v521
    %v574 = vunpack.c.h.b16 %v521
    %v575 = vunpack.c.l.b16 %v522
    %v576 = vunpack.c.h.b16 %v522
    %v577 = vunpack.c.l.b16 %v523
    %v578 = vunpack.c.h.b16 %v523
    %v579 = vunpack.c.l.b16 %v524
    %v580 = vunpack.c.h.b16 %v524
    %v581 = vunpack.c.l.b16 %v525
    %v582 = vunpack.c.h.b16 %v525
    %v583 = vunpack.c.l.b16 %v526
    %v584 = vunpack.c.h.b16 %v526
    %v585 = vunpack.c.l.b16 %v527
    %v586 = vunpack.c.h.b16 %v527
    %v587 = vunpack.c.l.b16 %v528
    %v588 = vunpack.c.h.b16 %v528
    %v589 = vpack.c.b16 %v559, %v557
    %v590 = vpack.c.b16 %v560, %v558
    %v591 = vpack.c.b16 %v563, %v561
    %v592 = vpack.c.b16 %v564, %v562
    %v593 = vpack.c.b16 %v567, %v565
    %v594 = vpack.c.b16 %v568, %v566
    %v595 = vpack.c.b16 %v571, %v569
    %v596 = vpack.c.b16 %v572, %v570
    %v597 = vpack.c.b16 %v575, %v573
    %v598 = vpack.c.b16 %v576, %v574
    %v599 = vpack.c.b16 %v579, %v577
    %v600 = vpack.c.b16 %v580, %v578
    %v601 = vpack.c.b16 %v583, %v581
    %v602 = vpack.c.b16 %v584, %v582
    %v603 = vpack.c.b16 %v587, %v585
    %v604 = vpack.c.b16 %v588, %v586
    %621 = vmatprep.subr.bf16.mxu0 %v590
    %622 = vmatpush1.bf16.msra.mxu0 %v589
    %623 = vmatprep.subr.bf16.mxu0 %v592
    %624 = vmatpush1.bf16.msra.mxu0 %v591
    %625 = vmatprep.subr.bf16.mxu0 %v594
    %626 = vmatpush1.bf16.msra.mxu0 %v593
    %627 = vmatprep.subr.bf16.mxu0 %v596
    %628 = vmatpush1.bf16.msra.mxu0 %v595
    %629 = vmatprep.subr.bf16.mxu0 %v598
    %630 = vmatpush1.bf16.msra.mxu0 %v597
    %631 = vmatprep.subr.bf16.mxu0 %v600
    %632 = vmatpush1.bf16.msra.mxu0 %v599
    %633 = vmatprep.subr.bf16.mxu0 %v602
    %634 = vmatpush1.bf16.msra.mxu0 %v601
    %635 = vmatprep.subr.bf16.mxu0 %v604
    %636 = vmatpush1.bf16.msra.mxu0 %v603
    %637 = vmatprep.subr.bf16.mxu0 0
    %638 = vmatpush1.bf16.msra.mxu0 0
    %639 = vmatprep.subr.bf16.mxu0 0
    %640 = vmatpush1.bf16.msra.mxu0 0
    %641 = vmatprep.subr.bf16.mxu0 0
    %642 = vmatpush1.bf16.msra.mxu0 0
    %643 = vmatprep.subr.bf16.mxu0 0
    %644 = vmatpush1.bf16.msra.mxu0 0
    %645 = vmatprep.subr.bf16.mxu0 0
    %646 = vmatpush1.bf16.msra.mxu0 0
    %647 = vmatprep.subr.bf16.mxu0 0
    %648 = vmatpush1.bf16.msra.mxu0 0
    %649 = vmatprep.subr.bf16.mxu0 0
    %650 = vmatpush1.bf16.msra.mxu0 0
    %651 = vmatprep.subr.bf16.mxu0 0
    %652 = vmatpush1.bf16.msra.mxu0 0
    %653 = vmatprep.mubr.bf16.mxu0 0
    %654 = vmatmul.mubr.bf16.gmra.mrb[0].mxu0 %v342
    %v655 = vpop.f32.mrb[0].mxu0
    %v656 = vadd.f32 %v534, %v655
    %v657 = vpop.f32.mrb[0].mxu0
    %v658 = vadd.f32 %v538, %v657
    %v659 = vpop.f32.mrb[0].mxu0
    %v660 = vpop.f32.mrb[0].mxu0
    %661 = vdwg.mxu0
    %v662 = vld [vmem:[%s7] sm:$0xf]
    %v663 = vld [vmem:[%s7 + $0x4] sm:$0xf]
    %v664 = vld [vmem:[%s7 + $0x8] sm:$0xf]
    %v665 = vld [vmem:[%s7 + $0xc] sm:$0xf]
    %v666 = vld [vmem:[%s7 + $0x10] sm:$0xf]
    %v667 = vld [vmem:[%s7 + $0x14] sm:$0xf]
    %v668 = vld [vmem:[%s7 + $0x18] sm:$0xf]
    %v669 = vld [vmem:[%s7 + $0x1c] sm:$0xf]
    %v670 = vld [vmem:[%s7 + $0x20] sm:$0xf]
    %v671 = vld [vmem:[%s7 + $0x24] sm:$0xf]
    %v672 = vld [vmem:[%s7 + $0x28] sm:$0xf]
    %v673 = vld [vmem:[%s7 + $0x2c] sm:$0xf]
    %v674 = vld [vmem:[%s7 + $0x30] sm:$0xf]
    %v675 = vld [vmem:[%s7 + $0x34] sm:$0xf]
    %v676 = vld [vmem:[%s7 + $0x38] sm:$0xf]
    %v677 = vld [vmem:[%s7 + $0x3c] sm:$0xf]
    %v678 = vld [vmem:[%s8] sm:$0x1]
    %v680 = vlaneseq
    %v681 = vshrl.u32 %v680, 7
    %v682 = vsub.s32 0, %v681
    %v683 = vrot.slane %v678, %v682
    %v701 = vunpack.c.l.b16 %v662
    %v702 = vunpack.c.l.b16 %v663
    %v703 = vunpack.c.l.b16 %v664
    %v704 = vunpack.c.l.b16 %v665
    %v705 = vunpack.c.l.b16 %v666
    %v706 = vunpack.c.l.b16 %v667
    %v707 = vunpack.c.l.b16 %v668
    %v708 = vunpack.c.l.b16 %v669
    %v709 = vunpack.c.l.b16 %v670
    %v710 = vunpack.c.l.b16 %v671
    %v711 = vunpack.c.l.b16 %v672
    %v712 = vunpack.c.l.b16 %v673
    %v713 = vunpack.c.l.b16 %v674
    %v714 = vunpack.c.l.b16 %v675
    %v715 = vunpack.c.l.b16 %v676
    %v716 = vunpack.c.l.b16 %v677
    %v717 = vpack.c.b16 %v702, %v701
    %v718 = vpack.c.b16 %v704, %v703
    %v719 = vpack.c.b16 %v706, %v705
    %v720 = vpack.c.b16 %v708, %v707
    %v721 = vpack.c.b16 %v710, %v709
    %v722 = vpack.c.b16 %v712, %v711
    %v723 = vpack.c.b16 %v714, %v713
    %v724 = vpack.c.b16 %v716, %v715
    %733 = vmatprep.subr.bf16.mxu0 0
    %734 = vmatpush1.bf16.msra.mxu0 %v717
    %735 = vmatprep.subr.bf16.mxu0 0
    %736 = vmatpush1.bf16.msra.mxu0 %v718
    %737 = vmatprep.subr.bf16.mxu0 0
    %738 = vmatpush1.bf16.msra.mxu0 %v719
    %739 = vmatprep.subr.bf16.mxu0 0
    %740 = vmatpush1.bf16.msra.mxu0 %v720
    %741 = vmatprep.subr.bf16.mxu0 0
    %742 = vmatpush1.bf16.msra.mxu0 %v721
    %743 = vmatprep.subr.bf16.mxu0 0
    %744 = vmatpush1.bf16.msra.mxu0 %v722
    %745 = vmatprep.subr.bf16.mxu0 0
    %746 = vmatpush1.bf16.msra.mxu0 %v723
    %747 = vmatprep.subr.bf16.mxu0 0
    %748 = vmatpush1.bf16.msra.mxu0 %v724
    %749 = vmatprep.subr.bf16.mxu0 0
    %750 = vmatpush1.bf16.msra.mxu0 0
    %751 = vmatprep.subr.bf16.mxu0 0
    %752 = vmatpush1.bf16.msra.mxu0 0
    %753 = vmatprep.subr.bf16.mxu0 0
    %754 = vmatpush1.bf16.msra.mxu0 0
    %755 = vmatprep.subr.bf16.mxu0 0
    %756 = vmatpush1.bf16.msra.mxu0 0
    %757 = vmatprep.subr.bf16.mxu0 0
    %758 = vmatpush1.bf16.msra.mxu0 0
    %759 = vmatprep.subr.bf16.mxu0 0
    %760 = vmatpush1.bf16.msra.mxu0 0
    %761 = vmatprep.subr.bf16.mxu0 0
    %762 = vmatpush1.bf16.msra.mxu0 0
    %763 = vmatprep.subr.bf16.mxu0 0
    %764 = vmatpush1.bf16.msra.mxu0 0
    %765 = vmatprep.mubr.bf16.mxu0 0
    %766 = vmatmul.mubr.bf16.gmra.mrb[0].mxu0 %v345
    %v767 = vpop.f32.mrb[0].mxu0
    %v768 = vadd.f32 %v683, %v767
    %v769 = vpop.f32.mrb[0].mxu0
    %v770 = vpop.f32.mrb[0].mxu0
    %v771 = vpop.f32.mrb[0].mxu0
    %772 = vdwg.mxu0
    %v773 = vpack.c.bf16 %v656, %v656
    %v774 = vpack.c.bf16 %v658, %v658
    %v777 = vunpack.c.l.b16 %v773
    %v778 = vunpack.c.l.b16 %v774
    %v779 = vpack.c.b16 %v778, %v777
    %781 = vst [vmem:[#allocation2] sm:$0xff] %v779
    %v782 = vpack.c.bf16 %v768, %v768
    %783 = vst [vmem:[#allocation4] sm:$0xf] %v782
    %784 = vset.pattern.permute.xlu0 0
    %785 = vperm.xlu0 %784, %v482
    %v786 = vpop.permute.xlu0 %785
    %v788 = vmul.f32 %v656, %v786
    %v789 = vmul.f32 %v658, %v786
    %v790 = vadd.f32 %v788, 0.0
    %v791 = vadd.f32 %v789, 0.0
    %792 = vset.pattern.permute.xlu0 3
    %793 = vperm.xlu0 %792, %v498
    %v794 = vpop.permute.xlu0 %793
    %v796 = vmul.f32 %v768, %v794
    %v797 = vadd.f32 %v796, 0.0
    %s798 = scalar_lea.vmem %s5, 128
    %v799 = vld [vmem:[%s798] sm:$0xff]
    %v800 = vld [vmem:[%s798 + $0x8] sm:$0xff]
    %v801 = vld [vmem:[%s798 + $0x10] sm:$0xff]
    %v802 = vld [vmem:[%s798 + $0x18] sm:$0xff]
    %v803 = vld [vmem:[%s798 + $0x20] sm:$0xff]
    %v804 = vld [vmem:[%s798 + $0x28] sm:$0xff]
    %v805 = vld [vmem:[%s798 + $0x30] sm:$0xff]
    %v806 = vld [vmem:[%s798 + $0x38] sm:$0xff]
    %v807 = vld [vmem:[%s798 + $0x40] sm:$0xff]
    %v808 = vld [vmem:[%s798 + $0x48] sm:$0xff]
    %v809 = vld [vmem:[%s798 + $0x50] sm:$0xff]
    %v810 = vld [vmem:[%s798 + $0x58] sm:$0xff]
    %v811 = vld [vmem:[%s798 + $0x60] sm:$0xff]
    %v812 = vld [vmem:[%s798 + $0x68] sm:$0xff]
    %v813 = vld [vmem:[%s798 + $0x70] sm:$0xff]
    %v814 = vld [vmem:[%s798 + $0x78] sm:$0xff]
    %s815 = scalar_lea.vmem %s6, 2
    %v816 = vld [vmem:[%s815] sm:$0x3]
    %v818 = vlaneseq
    %v819 = vshrl.u32 %v818, 7
    %v820 = vsub.s32 0, %v819
    %v821 = vrot.slane %v816, %v820
    %v822 = vlaneseq
    %v823 = vshrl.u32 %v822, 7
    %v824 = vsub.s32 1, %v823
    %v825 = vrot.slane %v816, %v824
    %v844 = vunpack.c.l.b16 %v799
    %v845 = vunpack.c.h.b16 %v799
    %v846 = vunpack.c.l.b16 %v800
    %v847 = vunpack.c.h.b16 %v800
    %v848 = vunpack.c.l.b16 %v801
    %v849 = vunpack.c.h.b16 %v801
    %v850 = vunpack.c.l.b16 %v802
    %v851 = vunpack.c.h.b16 %v802
    %v852 = vunpack.c.l.b16 %v803
    %v853 = vunpack.c.h.b16 %v803
    %v854 = vunpack.c.l.b16 %v804
    %v855 = vunpack.c.h.b16 %v804
    %v856 = vunpack.c.l.b16 %v805
    %v857 = vunpack.c.h.b16 %v805
    %v858 = vunpack.c.l.b16 %v806
    %v859 = vunpack.c.h.b16 %v806
    %v860 = vunpack.c.l.b16 %v807
    %v861 = vunpack.c.h.b16 %v807
    %v862 = vunpack.c.l.b16 %v808
    %v863 = vunpack.c.h.b16 %v808
    %v864 = vunpack.c.l.b16 %v809
    %v865 = vunpack.c.h.b16 %v809
    %v866 = vunpack.c.l.b16 %v810
    %v867 = vunpack.c.h.b16 %v810
    %v868 = vunpack.c.l.b16 %v811
    %v869 = vunpack.c.h.b16 %v811
    %v870 = vunpack.c.l.b16 %v812
    %v871 = vunpack.c.h.b16 %v812
    %v872 = vunpack.c.l.b16 %v813
    %v873 = vunpack.c.h.b16 %v813
    %v874 = vunpack.c.l.b16 %v814
    %v875 = vunpack.c.h.b16 %v814
    %v876 = vpack.c.b16 %v846, %v844
    %v877 = vpack.c.b16 %v847, %v845
    %v878 = vpack.c.b16 %v850, %v848
    %v879 = vpack.c.b16 %v851, %v849
    %v880 = vpack.c.b16 %v854, %v852
    %v881 = vpack.c.b16 %v855, %v853
    %v882 = vpack.c.b16 %v858, %v856
    %v883 = vpack.c.b16 %v859, %v857
    %v884 = vpack.c.b16 %v862, %v860
    %v885 = vpack.c.b16 %v863, %v861
    %v886 = vpack.c.b16 %v866, %v864
    %v887 = vpack.c.b16 %v867, %v865
    %v888 = vpack.c.b16 %v870, %v868
    %v889 = vpack.c.b16 %v871, %v869
    %v890 = vpack.c.b16 %v874, %v872
    %v891 = vpack.c.b16 %v875, %v873
    %908 = vmatprep.subr.bf16.mxu0 %v877
    %909 = vmatpush1.bf16.msra.mxu0 %v876
    %910 = vmatprep.subr.bf16.mxu0 %v879
    %911 = vmatpush1.bf16.msra.mxu0 %v878
    %912 = vmatprep.subr.bf16.mxu0 %v881
    %913 = vmatpush1.bf16.msra.mxu0 %v880
    %914 = vmatprep.subr.bf16.mxu0 %v883
    %915 = vmatpush1.bf16.msra.mxu0 %v882
    %916 = vmatprep.subr.bf16.mxu0 %v885
    %917 = vmatpush1.bf16.msra.mxu0 %v884
    %918 = vmatprep.subr.bf16.mxu0 %v887
    %919 = vmatpush1.bf16.msra.mxu0 %v886
    %920 = vmatprep.subr.bf16.mxu0 %v889
    %921 = vmatpush1.bf16.msra.mxu0 %v888
    %922 = vmatprep.subr.bf16.mxu0 %v891
    %923 = vmatpush1.bf16.msra.mxu0 %v890
    %924 = vmatprep.subr.bf16.mxu0 0
    %925 = vmatpush1.bf16.msra.mxu0 0
    %926 = vmatprep.subr.bf16.mxu0 0
    %927 = vmatpush1.bf16.msra.mxu0 0
    %928 = vmatprep.subr.bf16.mxu0 0
    %929 = vmatpush1.bf16.msra.mxu0 0
    %930 = vmatprep.subr.bf16.mxu0 0
    %931 = vmatpush1.bf16.msra.mxu0 0
    %932 = vmatprep.subr.bf16.mxu0 0
    %933 = vmatpush1.bf16.msra.mxu0 0
    %934 = vmatprep.subr.bf16.mxu0 0
    %935 = vmatpush1.bf16.msra.mxu0 0
    %936 = vmatprep.subr.bf16.mxu0 0
    %937 = vmatpush1.bf16.msra.mxu0 0
    %938 = vmatprep.subr.bf16.mxu0 0
    %939 = vmatpush1.bf16.msra.mxu0 0
    %940 = vmatprep.mubr.bf16.mxu0 0
    %941 = vmatmul.mubr.bf16.gmra.mrb[0].mxu0 %v343
    %v942 = vpop.f32.mrb[0].mxu0
    %v943 = vadd.f32 %v821, %v942
    %v944 = vpop.f32.mrb[0].mxu0
    %v945 = vadd.f32 %v825, %v944
    %v946 = vpop.f32.mrb[0].mxu0
    %v947 = vpop.f32.mrb[0].mxu0
    %948 = vdwg.mxu0
    %s949 = scalar_lea.vmem %s7, 64
    %v950 = vld [vmem:[%s949] sm:$0xf]
    %v951 = vld [vmem:[%s949 + $0x4] sm:$0xf]
    %v952 = vld [vmem:[%s949 + $0x8] sm:$0xf]
    %v953 = vld [vmem:[%s949 + $0xc] sm:$0xf]
    %v954 = vld [vmem:[%s949 + $0x10] sm:$0xf]
    %v955 = vld [vmem:[%s949 + $0x14] sm:$0xf]
    %v956 = vld [vmem:[%s949 + $0x18] sm:$0xf]
    %v957 = vld [vmem:[%s949 + $0x1c] sm:$0xf]
    %v958 = vld [vmem:[%s949 + $0x20] sm:$0xf]
    %v959 = vld [vmem:[%s949 + $0x24] sm:$0xf]
    %v960 = vld [vmem:[%s949 + $0x28] sm:$0xf]
    %v961 = vld [vmem:[%s949 + $0x2c] sm:$0xf]
    %v962 = vld [vmem:[%s949 + $0x30] sm:$0xf]
    %v963 = vld [vmem:[%s949 + $0x34] sm:$0xf]
    %v964 = vld [vmem:[%s949 + $0x38] sm:$0xf]
    %v965 = vld [vmem:[%s949 + $0x3c] sm:$0xf]
    %s966 = scalar_lea.vmem %s8, 1
    %v967 = vld [vmem:[%s966] sm:$0x1]
    %v969 = vlaneseq
    %v970 = vshrl.u32 %v969, 7
    %v971 = vsub.s32 0, %v970
    %v972 = vrot.slane %v967, %v971
    %v990 = vunpack.c.l.b16 %v950
    %v991 = vunpack.c.l.b16 %v951
    %v992 = vunpack.c.l.b16 %v952
    %v993 = vunpack.c.l.b16 %v953
    %v994 = vunpack.c.l.b16 %v954
    %v995 = vunpack.c.l.b16 %v955
    %v996 = vunpack.c.l.b16 %v956
    %v997 = vunpack.c.l.b16 %v957
    %v998 = vunpack.c.l.b16 %v958
    %v999 = vunpack.c.l.b16 %v959
    %v1000 = vunpack.c.l.b16 %v960
    %v1001 = vunpack.c.l.b16 %v961
    %v1002 = vunpack.c.l.b16 %v962
    %v1003 = vunpack.c.l.b16 %v963
    %v1004 = vunpack.c.l.b16 %v964
    %v1005 = vunpack.c.l.b16 %v965
    %v1006 = vpack.c.b16 %v991, %v990
    %v1007 = vpack.c.b16 %v993, %v992
    %v1008 = vpack.c.b16 %v995, %v994
    %v1009 = vpack.c.b16 %v997, %v996
    %v1010 = vpack.c.b16 %v999, %v998
    %v1011 = vpack.c.b16 %v1001, %v1000
    %v1012 = vpack.c.b16 %v1003, %v1002
    %v1013 = vpack.c.b16 %v1005, %v1004
    %1022 = vmatprep.subr.bf16.mxu0 0
    %1023 = vmatpush1.bf16.msra.mxu0 %v1006
    %1024 = vmatprep.subr.bf16.mxu0 0
    %1025 = vmatpush1.bf16.msra.mxu0 %v1007
    %1026 = vmatprep.subr.bf16.mxu0 0
    %1027 = vmatpush1.bf16.msra.mxu0 %v1008
    %1028 = vmatprep.subr.bf16.mxu0 0
    %1029 = vmatpush1.bf16.msra.mxu0 %v1009
    %1030 = vmatprep.subr.bf16.mxu0 0
    %1031 = vmatpush1.bf16.msra.mxu0 %v1010
    %1032 = vmatprep.subr.bf16.mxu0 0
    %1033 = vmatpush1.bf16.msra.mxu0 %v1011
    %1034 = vmatprep.subr.bf16.mxu0 0
    %1035 = vmatpush1.bf16.msra.mxu0 %v1012
    %1036 = vmatprep.subr.bf16.mxu0 0
    %1037 = vmatpush1.bf16.msra.mxu0 %v1013
    %1038 = vmatprep.subr.bf16.mxu0 0
    %1039 = vmatpush1.bf16.msra.mxu0 0
    %1040 = vmatprep.subr.bf16.mxu0 0
    %1041 = vmatpush1.bf16.msra.mxu0 0
    %1042 = vmatprep.subr.bf16.mxu0 0
    %1043 = vmatpush1.bf16.msra.mxu0 0
    %1044 = vmatprep.subr.bf16.mxu0 0
    %1045 = vmatpush1.bf16.msra.mxu0 0
    %1046 = vmatprep.subr.bf16.mxu0 0
    %1047 = vmatpush1.bf16.msra.mxu0 0
    %1048 = vmatprep.subr.bf16.mxu0 0
    %1049 = vmatpush1.bf16.msra.mxu0 0
    %1050 = vmatprep.subr.bf16.mxu0 0
    %1051 = vmatpush1.bf16.msra.mxu0 0
    %1052 = vmatprep.subr.bf16.mxu0 0
    %1053 = vmatpush1.bf16.msra.mxu0 0
    %1054 = vmatprep.mubr.bf16.mxu0 0
    %1055 = vmatmul.mubr.bf16.gmra.mrb[0].mxu0 %v346
    %v1056 = vpop.f32.mrb[0].mxu0
    %v1057 = vadd.f32 %v972, %v1056
    %v1058 = vpop.f32.mrb[0].mxu0
    %v1059 = vpop.f32.mrb[0].mxu0
    %v1060 = vpop.f32.mrb[0].mxu0
    %1061 = vdwg.mxu0
    %v1062 = vpack.c.bf16 %v943, %v943
    %v1063 = vpack.c.bf16 %v945, %v945
    %v1066 = vunpack.c.l.b16 %v1062
    %v1067 = vunpack.c.l.b16 %v1063
    %v1068 = vpack.c.b16 %v1067, %v1066
    %s1070 = scalar_lea.vmem [#allocation2], 8
    %1071 = vst [vmem:[%s1070] sm:$0xff] %v1068
    %v1072 = vpack.c.bf16 %v1057, %v1057
    %s1073 = scalar_lea.vmem [#allocation4], 4
    %1074 = vst [vmem:[%s1073] sm:$0xf] %v1072
    %1075 = vset.pattern.permute.xlu0 1
    %1076 = vperm.xlu0 %1075, %v482
    %v1077 = vpop.permute.xlu0 %1076
    %v1079 = vmul.f32 %v943, %v1077
    %v1080 = vmul.f32 %v945, %v1077
    %v1081 = vadd.f32 %v790, %v1079
    %v1082 = vadd.f32 %v791, %v1080
    %1083 = vset.pattern.permute.xlu0 4
    %1084 = vperm.xlu0 %1083, %v498
    %v1085 = vpop.permute.xlu0 %1084
    %v1087 = vmul.f32 %v1057, %v1085
    %v1088 = vadd.f32 %v797, %v1087
    %s1089 = scalar_lea.vmem %s5, 256
    %v1090 = vld [vmem:[%s1089] sm:$0xff]
    %v1091 = vld [vmem:[%s1089 + $0x8] sm:$0xff]
    %v1092 = vld [vmem:[%s1089 + $0x10] sm:$0xff]
    %v1093 = vld [vmem:[%s1089 + $0x18] sm:$0xff]
    %v1094 = vld [vmem:[%s1089 + $0x20] sm:$0xff]
    %v1095 = vld [vmem:[%s1089 + $0x28] sm:$0xff]
    %v1096 = vld [vmem:[%s1089 + $0x30] sm:$0xff]
    %v1097 = vld [vmem:[%s1089 + $0x38] sm:$0xff]
    %v1098 = vld [vmem:[%s1089 + $0x40] sm:$0xff]
    %v1099 = vld [vmem:[%s1089 + $0x48] sm:$0xff]
    %v1100 = vld [vmem:[%s1089 + $0x50] sm:$0xff]
    %v1101 = vld [vmem:[%s1089 + $0x58] sm:$0xff]
    %v1102 = vld [vmem:[%s1089 + $0x60] sm:$0xff]
    %v1103 = vld [vmem:[%s1089 + $0x68] sm:$0xff]
    %v1104 = vld [vmem:[%s1089 + $0x70] sm:$0xff]
    %v1105 = vld [vmem:[%s1089 + $0x78] sm:$0xff]
    %s1106 = scalar_lea.vmem %s6, 4
    %v1107 = vld [vmem:[%s1106] sm:$0x3]
    %v1109 = vlaneseq
    %v1110 = vshrl.u32 %v1109, 7
    %v1111 = vsub.s32 0, %v1110
    %v1112 = vrot.slane %v1107, %v1111
    %v1113 = vlaneseq
    %v1114 = vshrl.u32 %v1113, 7
    %v1115 = vsub.s32 1, %v1114
    %v1116 = vrot.slane %v1107, %v1115
    %v1135 = vunpack.c.l.b16 %v1090
    %v1136 = vunpack.c.h.b16 %v1090
    %v1137 = vunpack.c.l.b16 %v1091
    %v1138 = vunpack.c.h.b16 %v1091
    %v1139 = vunpack.c.l.b16 %v1092
    %v1140 = vunpack.c.h.b16 %v1092
    %v1141 = vunpack.c.l.b16 %v1093
    %v1142 = vunpack.c.h.b16 %v1093
    %v1143 = vunpack.c.l.b16 %v1094
    %v1144 = vunpack.c.h.b16 %v1094
    %v1145 = vunpack.c.l.b16 %v1095
    %v1146 = vunpack.c.h.b16 %v1095
    %v1147 = vunpack.c.l.b16 %v1096
    %v1148 = vunpack.c.h.b16 %v1096
    %v1149 = vunpack.c.l.b16 %v1097
    %v1150 = vunpack.c.h.b16 %v1097
    %v1151 = vunpack.c.l.b16 %v1098
    %v1152 = vunpack.c.h.b16 %v1098
    %v1153 = vunpack.c.l.b16 %v1099
    %v1154 = vunpack.c.h.b16 %v1099
    %v1155 = vunpack.c.l.b16 %v1100
    %v1156 = vunpack.c.h.b16 %v1100
    %v1157 = vunpack.c.l.b16 %v1101
    %v1158 = vunpack.c.h.b16 %v1101
    %v1159 = vunpack.c.l.b16 %v1102
    %v1160 = vunpack.c.h.b16 %v1102
    %v1161 = vunpack.c.l.b16 %v1103
    %v1162 = vunpack.c.h.b16 %v1103
    %v1163 = vunpack.c.l.b16 %v1104
    %v1164 = vunpack.c.h.b16 %v1104
    %v1165 = vunpack.c.l.b16 %v1105
    %v1166 = vunpack.c.h.b16 %v1105
    %v1167 = vpack.c.b16 %v1137, %v1135
    %v1168 = vpack.c.b16 %v1138, %v1136
    %v1169 = vpack.c.b16 %v1141, %v1139
    %v1170 = vpack.c.b16 %v1142, %v1140
    %v1171 = vpack.c.b16 %v1145, %v1143
    %v1172 = vpack.c.b16 %v1146, %v1144
    %v1173 = vpack.c.b16 %v1149, %v1147
    %v1174 = vpack.c.b16 %v1150, %v1148
    %v1175 = vpack.c.b16 %v1153, %v1151
    %v1176 = vpack.c.b16 %v1154, %v1152
    %v1177 = vpack.c.b16 %v1157, %v1155
    %v1178 = vpack.c.b16 %v1158, %v1156
    %v1179 = vpack.c.b16 %v1161, %v1159
    %v1180 = vpack.c.b16 %v1162, %v1160
    %v1181 = vpack.c.b16 %v1165, %v1163
    %v1182 = vpack.c.b16 %v1166, %v1164
    %1199 = vmatprep.subr.bf16.mxu0 %v1168
    %1200 = vmatpush1.bf16.msra.mxu0 %v1167
    %1201 = vmatprep.subr.bf16.mxu0 %v1170
    %1202 = vmatpush1.bf16.msra.mxu0 %v1169
    %1203 = vmatprep.subr.bf16.mxu0 %v1172
    %1204 = vmatpush1.bf16.msra.mxu0 %v1171
    %1205 = vmatprep.subr.bf16.mxu0 %v1174
    %1206 = vmatpush1.bf16.msra.mxu0 %v1173
    %1207 = vmatprep.subr.bf16.mxu0 %v1176
    %1208 = vmatpush1.bf16.msra.mxu0 %v1175
    %1209 = vmatprep.subr.bf16.mxu0 %v1178
    %1210 = vmatpush1.bf16.msra.mxu0 %v1177
    %1211 = vmatprep.subr.bf16.mxu0 %v1180
    %1212 = vmatpush1.bf16.msra.mxu0 %v1179
    %1213 = vmatprep.subr.bf16.mxu0 %v1182
    %1214 = vmatpush1.bf16.msra.mxu0 %v1181
    %1215 = vmatprep.subr.bf16.mxu0 0
    %1216 = vmatpush1.bf16.msra.mxu0 0
    %1217 = vmatprep.subr.bf16.mxu0 0
    %1218 = vmatpush1.bf16.msra.mxu0 0
    %1219 = vmatprep.subr.bf16.mxu0 0
    %1220 = vmatpush1.bf16.msra.mxu0 0
    %1221 = vmatprep.subr.bf16.mxu0 0
    %1222 = vmatpush1.bf16.msra.mxu0 0
    %1223 = vmatprep.subr.bf16.mxu0 0
    %1224 = vmatpush1.bf16.msra.mxu0 0
    %1225 = vmatprep.subr.bf16.mxu0 0
    %1226 = vmatpush1.bf16.msra.mxu0 0
    %1227 = vmatprep.subr.bf16.mxu0 0
    %1228 = vmatpush1.bf16.msra.mxu0 0
    %1229 = vmatprep.subr.bf16.mxu0 0
    %1230 = vmatpush1.bf16.msra.mxu0 0
    %1231 = vmatprep.mubr.bf16.mxu0 0
    %1232 = vmatmul.mubr.bf16.gmra.mrb[0].mxu0 %v344
    %v1233 = vpop.f32.mrb[0].mxu0
    %v1234 = vadd.f32 %v1112, %v1233
    %v1235 = vpop.f32.mrb[0].mxu0
    %v1236 = vadd.f32 %v1116, %v1235
    %v1237 = vpop.f32.mrb[0].mxu0
    %v1238 = vpop.f32.mrb[0].mxu0
    %1239 = vdwg.mxu0
    %s1240 = scalar_lea.vmem %s7, 128
    %v1241 = vld [vmem:[%s1240] sm:$0xf]
    %v1242 = vld [vmem:[%s1240 + $0x4] sm:$0xf]
    %v1243 = vld [vmem:[%s1240 + $0x8] sm:$0xf]
    %v1244 = vld [vmem:[%s1240 + $0xc] sm:$0xf]
    %v1245 = vld [vmem:[%s1240 + $0x10] sm:$0xf]
    %v1246 = vld [vmem:[%s1240 + $0x14] sm:$0xf]
    %v1247 = vld [vmem:[%s1240 + $0x18] sm:$0xf]
    %v1248 = vld [vmem:[%s1240 + $0x1c] sm:$0xf]
    %v1249 = vld [vmem:[%s1240 + $0x20] sm:$0xf]
    %v1250 = vld [vmem:[%s1240 + $0x24] sm:$0xf]
    %v1251 = vld [vmem:[%s1240 + $0x28] sm:$0xf]
    %v1252 = vld [vmem:[%s1240 + $0x2c] sm:$0xf]
    %v1253 = vld [vmem:[%s1240 + $0x30] sm:$0xf]
    %v1254 = vld [vmem:[%s1240 + $0x34] sm:$0xf]
    %v1255 = vld [vmem:[%s1240 + $0x38] sm:$0xf]
    %v1256 = vld [vmem:[%s1240 + $0x3c] sm:$0xf]
    %s1257 = scalar_lea.vmem %s8, 2
    %v1258 = vld [vmem:[%s1257] sm:$0x1]
    %v1260 = vlaneseq
    %v1261 = vshrl.u32 %v1260, 7
    %v1262 = vsub.s32 0, %v1261
    %v1263 = vrot.slane %v1258, %v1262
    %v1281 = vunpack.c.l.b16 %v1241
    %v1282 = vunpack.c.l.b16 %v1242
    %v1283 = vunpack.c.l.b16 %v1243
    %v1284 = vunpack.c.l.b16 %v1244
    %v1285 = vunpack.c.l.b16 %v1245
    %v1286 = vunpack.c.l.b16 %v1246
    %v1287 = vunpack.c.l.b16 %v1247
    %v1288 = vunpack.c.l.b16 %v1248
    %v1289 = vunpack.c.l.b16 %v1249
    %v1290 = vunpack.c.l.b16 %v1250
    %v1291 = vunpack.c.l.b16 %v1251
    %v1292 = vunpack.c.l.b16 %v1252
    %v1293 = vunpack.c.l.b16 %v1253
    %v1294 = vunpack.c.l.b16 %v1254
    %v1295 = vunpack.c.l.b16 %v1255
    %v1296 = vunpack.c.l.b16 %v1256
    %v1297 = vpack.c.b16 %v1282, %v1281
    %v1298 = vpack.c.b16 %v1284, %v1283
    %v1299 = vpack.c.b16 %v1286, %v1285
    %v1300 = vpack.c.b16 %v1288, %v1287
    %v1301 = vpack.c.b16 %v1290, %v1289
    %v1302 = vpack.c.b16 %v1292, %v1291
    %v1303 = vpack.c.b16 %v1294, %v1293
    %v1304 = vpack.c.b16 %v1296, %v1295
    %1313 = vmatprep.subr.bf16.mxu0 0
    %1314 = vmatpush1.bf16.msra.mxu0 %v1297
    %1315 = vmatprep.subr.bf16.mxu0 0
    %1316 = vmatpush1.bf16.msra.mxu0 %v1298
    %1317 = vmatprep.subr.bf16.mxu0 0
    %1318 = vmatpush1.bf16.msra.mxu0 %v1299
    %1319 = vmatprep.subr.bf16.mxu0 0
    %1320 = vmatpush1.bf16.msra.mxu0 %v1300
    %1321 = vmatprep.subr.bf16.mxu0 0
    %1322 = vmatpush1.bf16.msra.mxu0 %v1301
    %1323 = vmatprep.subr.bf16.mxu0 0
    %1324 = vmatpush1.bf16.msra.mxu0 %v1302
    %1325 = vmatprep.subr.bf16.mxu0 0
    %1326 = vmatpush1.bf16.msra.mxu0 %v1303
    %1327 = vmatprep.subr.bf16.mxu0 0
    %1328 = vmatpush1.bf16.msra.mxu0 %v1304
    %1329 = vmatprep.subr.bf16.mxu0 0
    %1330 = vmatpush1.bf16.msra.mxu0 0
    %1331 = vmatprep.subr.bf16.mxu0 0
    %1332 = vmatpush1.bf16.msra.mxu0 0
    %1333 = vmatprep.subr.bf16.mxu0 0
    %1334 = vmatpush1.bf16.msra.mxu0 0
    %1335 = vmatprep.subr.bf16.mxu0 0
    %1336 = vmatpush1.bf16.msra.mxu0 0
    %1337 = vmatprep.subr.bf16.mxu0 0
    %1338 = vmatpush1.bf16.msra.mxu0 0
    %1339 = vmatprep.subr.bf16.mxu0 0
    %1340 = vmatpush1.bf16.msra.mxu0 0
    %1341 = vmatprep.subr.bf16.mxu0 0
    %1342 = vmatpush1.bf16.msra.mxu0 0
    %1343 = vmatprep.subr.bf16.mxu0 0
    %1344 = vmatpush1.bf16.msra.mxu0 0
    %1345 = vmatprep.mubr.bf16.mxu0 0
    %1346 = vmatmul.mubr.bf16.gmra.mrb[0].mxu0 %v347
    %v1347 = vpop.f32.mrb[0].mxu0
    %v1348 = vadd.f32 %v1263, %v1347
    %v1349 = vpop.f32.mrb[0].mxu0
    %v1350 = vpop.f32.mrb[0].mxu0
    %v1351 = vpop.f32.mrb[0].mxu0
    %1352 = vdwg.mxu0
    %v1353 = vpack.c.bf16 %v1234, %v1234
    %v1354 = vpack.c.bf16 %v1236, %v1236
    %v1357 = vunpack.c.l.b16 %v1353
    %v1358 = vunpack.c.l.b16 %v1354
    %v1359 = vpack.c.b16 %v1358, %v1357
    %s1361 = scalar_lea.vmem [#allocation2], 16
    %1362 = vst [vmem:[%s1361] sm:$0xff] %v1359
    %v1363 = vpack.c.bf16 %v1348, %v1348
    %s1364 = scalar_lea.vmem [#allocation4], 8
    %1365 = vst [vmem:[%s1364] sm:$0xf] %v1363
    %1366 = vset.pattern.permute.xlu0 2
    %1367 = vperm.xlu0 %1366, %v482
    %v1368 = vpop.permute.xlu0 %1367
    %v1370 = vmul.f32 %v1234, %v1368
    %v1371 = vmul.f32 %v1236, %v1368
    %v1372 = vadd.f32 %v1081, %v1370
    %v1373 = vadd.f32 %v1082, %v1371
    %1374 = vset.pattern.permute.xlu0 5
    %1375 = vperm.xlu0 %1374, %v498
    %v1376 = vpop.permute.xlu0 %1375
    %v1378 = vmul.f32 %v1348, %v1376
    %v1379 = vadd.f32 %v1088, %v1378
    %1380 = vst [vmem:[#allocation6] sm:$0xff] %v1372
    %1381 = vst [vmem:[#allocation6 + $0x8] sm:$0xff] %v1373
    %1382 = vst [vmem:[#allocation7] sm:$0xff] %v1379
    // Predicated region
    $region38: #{moe_layer_forward.1} parent=1 // pred_check
      _
    $region39: #{moe_layer_forward.1} parent=1 // pred_check_branch
      %1384 = sbr.rel (0) target = $region41
    $region40: #{moe_layer_forward.1} parent=1 // pred_region
      _
    $region41: #{moe_layer_forward.1} parent=1 // pred_fallthru
      _
    // Predicated region
    $region42: #{moe_layer_forward.1} parent=1 // pred_check
      _
    $region43: #{moe_layer_forward.1} parent=1 // pred_check_branch
      %1386 = sbr.rel (0) target = $region45
    $region44: #{moe_layer_forward.1} parent=1 // pred_region
      %s1388 = ssub.s32 384, 384
      %1389 = vsyncadd [#allocation3], %s1388
      %s1390 = sshll.u32 [#allocation2], 4
      %s1391 = int_to_ptr.vmem [resolvable:$true] %s1390
      %1396 = dma.vmem_to_hbm [thread:$0]  %s1391, 384, %s10, [#allocation3], 128, 128, 8
    $region45: #{moe_layer_forward.1} parent=1 // pred_fallthru
      _
    // Predicated region
    $region46: #{moe_layer_forward.1} parent=1 // pred_check
      _
    $region47: #{moe_layer_forward.1} parent=1 // pred_check_branch
      %1398 = sbr.rel (0) target = $region49
    $region48: #{moe_layer_forward.1} parent=1 // pred_region
      %s1400 = ssub.s32 192, 192
      %1401 = vsyncadd [#allocation5], %s1400
      %s1402 = sshll.u32 [#allocation4], 4
      %s1403 = int_to_ptr.vmem [resolvable:$true] %s1402
      %1408 = dma.vmem_to_hbm [thread:$0]  %s1403, 192, %s11, [#allocation5], 64, 64, 4
    $region49: #{moe_layer_forward.1} parent=1 // pred_fallthru
      _
    // Predicated region
    $region50: #{moe_layer_forward.1} parent=1 // pred_check
      _
    $region51: #{moe_layer_forward.1} parent=1 // pred_check_branch
      %1410 = sbr.rel (0) target = $region53
    $region52: #{moe_layer_forward.1} parent=1 // pred_region
      %s1412 = ssub.s32 256, 256
      %1413 = vsyncadd [#allocation5], %s1412
      %s1415 = sshll.u32 [#allocation6], 4
      %s1416 = int_to_ptr.vmem [resolvable:$true] %s1415
      %1418 = dma.vmem_to_hbm [thread:$0]  %s1416, 256, %s12, [#allocation5]
    $region53: #{moe_layer_forward.1} parent=1 // pred_fallthru
      _
    // Predicated region
    $region54: #{moe_layer_forward.1} parent=1 // pred_check
      _
    $region55: #{moe_layer_forward.1} parent=1 // pred_check_branch
      %1420 = sbr.rel (0) target = $region57
    $region56: #{moe_layer_forward.1} parent=1 // pred_region
      %s1422 = ssub.s32 128, 128
      %1423 = vsyncadd [#allocation8], %s1422
      %s1425 = sshll.u32 [#allocation7], 4
      %s1426 = int_to_ptr.vmem [resolvable:$true] %s1425
      %1428 = dma.vmem_to_hbm [thread:$0]  %s1426, 128, %s13, [#allocation8]
    $region57: #{moe_layer_forward.1} parent=1 // pred_fallthru
      _
    // Predicated region
    $region58: #{moe_layer_forward.1} parent=1 // pred_check
      _
    $region59: #{moe_layer_forward.1} parent=1 // pred_check_branch
      %1430 = sbr.rel (0) target = $region61
    $region60: #{moe_layer_forward.1} parent=1 // pred_region
      _
    $region61: #{moe_layer_forward.1} parent=1 // pred_fallthru
      _
    // Predicated region
    $region62: #{moe_layer_forward.1} parent=1 // pred_check
      _
    $region63: #{moe_layer_forward.1} parent=1 // pred_check_branch
      %1432 = sbr.rel (0) target = $region65
    $region64: #{moe_layer_forward.1} parent=1 // pred_region
      %1433 = dma.done [#allocation3], 384
    $region65: #{moe_layer_forward.1} parent=1 // pred_fallthru
      _
    // Predicated region
    $region66: #{moe_layer_forward.1} parent=1 // pred_check
      _
    $region67: #{moe_layer_forward.1} parent=1 // pred_check_branch
      %1435 = sbr.rel (0) target = $region69
    $region68: #{moe_layer_forward.1} parent=1 // pred_region
      %1436 = dma.done [#allocation5], 192
    $region69: #{moe_layer_forward.1} parent=1 // pred_fallthru
      _
    // Predicated region
    $region70: #{moe_layer_forward.1} parent=1 // pred_check
      _
    $region71: #{moe_layer_forward.1} parent=1 // pred_check_branch
      %1438 = sbr.rel (0) target = $region73
    $region72: #{moe_layer_forward.1} parent=1 // pred_region
      %1439 = dma.done [#allocation5], 256
    $region73: #{moe_layer_forward.1} parent=1 // pred_fallthru
      _
    // Predicated region
    $region74: #{moe_layer_forward.1} parent=1 // pred_check
      _
    $region75: #{moe_layer_forward.1} parent=1 // pred_check_branch
      %1441 = sbr.rel (0) target = $region77
    $region76: #{moe_layer_forward.1} parent=1 // pred_region
      %1442 = dma.done [#allocation8], 128
    $region77: #{moe_layer_forward.1} parent=1 // pred_fallthru
      _
    %1443 = vsyncpa [#allocation3], 1
    %1444 = vsyncpa [#allocation5], 1
    %1445 = vsyncpa [#allocation8], 1

</llo_original>
